<compile_context>
chip_gen: v6e
topology: v6e:2x2x1
jax: 0.10.0
libtpu: 0.0.40
codegen_flags: <defaults>
</compile_context>

<pallas_src>
import functools

import jax
import jax.numpy as jnp
import numpy as np
from jax.experimental import pallas as pl
from jax.experimental.pallas import tpu as pltpu

_EPS = 1e-5


# ----------------------------------------------------------------------------
# Pallas kernel: one batch element per grid step.
# ----------------------------------------------------------------------------
def _spectral_transform_kernel(
    x_ref,        # (Cin, F*E)   f32  one NCHW batch element (contiguous)
    w1_ref,       # (Ch, Cin)    bf16 conv1, BN1 scale folded
    t1_ref,       # (Ch, 1)      f32  BN1 shift
    dft_re_ref,   # (Fr, F)      bf16 rfft real rows
    dft_im_ref,   # (Fr, F)      bf16 rfft imag rows
    w2_re_ref,    # (2Ch, Ch)    bf16 inter_conv cols for real inputs, BN2 folded
    w2_im_ref,    # (2Ch, Ch)    bf16 inter_conv cols for imag inputs, BN2 folded
    b2_ref,       # (2Ch, 1)     f32  inter_conv bias + BN2 shift
    idft_re_ref,  # (F, Fr)      bf16 irfft real cols
    idft_im_ref,  # (F, Fr)      bf16 irfft imag cols
    w3_ref,       # (Cout, Ch)   bf16 conv2
    o_ref,        # (Cout, F*E)  f32
    *, F, E,
):
  f32 = jnp.float32
  bf16 = jnp.bfloat16
  ch = w1_ref.shape[0]
  fr = dft_re_ref.shape[0]
  fe = F * E

  # bf16 cast happens in-kernel (input DMA'd as f32; no wrapper cast pass).
  x = x_ref[...].astype(bf16)                                   # (Cin, F*E)

  # conv1 (1x1, BN folded) + ReLU.  Residual kept in bf16.
  res = jnp.dot(w1_ref[...], x, preferred_element_type=f32)
  res = jnp.maximum(res + t1_ref[...], 0.0)
  res_bf = res.astype(bf16)                                     # (Ch, F*E)

  # channel-major -> freq-major exchange (lane axis E untouched).
  res_b = res_bf.reshape(ch, F, E).transpose(1, 0, 2).reshape(F, ch * E)

  # rFFT along freq as LEFT-multiplications: lane dim = Ch*E (dense).
  s_re = jnp.dot(dft_re_ref[...], res_b, preferred_element_type=f32)
  s_im = jnp.dot(dft_im_ref[...], res_b, preferred_element_type=f32)

  # freq-major -> channel-major exchange for the channel-mixing 1x1 conv.
  re_c = (s_re.astype(bf16).reshape(fr, ch, E)
          .transpose(1, 0, 2).reshape(ch, fr * E))
  im_c = (s_im.astype(bf16).reshape(fr, ch, E)
          .transpose(1, 0, 2).reshape(ch, fr * E))

  # inter_conv (pre-split weights -> two accumulated dots, no concat) + ReLU.
  z = (jnp.dot(w2_re_ref[...], re_c, preferred_element_type=f32)
       + jnp.dot(w2_im_ref[...], im_c, preferred_element_type=f32))
  z = jnp.maximum(z + b2_ref[...], 0.0)                         # (2Ch, Fr*E)
  z_bf = z.astype(bf16)

  # channel-major -> freq-major exchange on the real / imag output halves.
  z_re_b = (z_bf[:ch].reshape(ch, fr, E)
            .transpose(1, 0, 2).reshape(fr, ch * E))
  z_im_b = (z_bf[ch:].reshape(ch, fr, E)
            .transpose(1, 0, 2).reshape(fr, ch * E))

  # irFFT as two accumulated LEFT-multiplications (no concat).
  rec = (jnp.dot(idft_re_ref[...], z_re_b, preferred_element_type=f32)
         + jnp.dot(idft_im_ref[...], z_im_b, preferred_element_type=f32))

  # freq-major -> channel-major exchange, residual add, conv2.
  rec_a = (rec.astype(bf16).reshape(F, ch, E)
           .transpose(1, 0, 2).reshape(ch, fe))
  y = rec_a + res_bf                                            # (Ch, F*E)
  out = jnp.dot(w3_ref[...], y, preferred_element_type=f32)
  o_ref[...] = out.astype(o_ref.dtype)                          # full-width store


def spectral_transform_pallas(x, p, *, out_dtype=jnp.float32):
  """x: (B, Cin, F, E) float32 NCHW. Returns (B, Cout, F, E) in out_dtype."""
  B, Cin, F, E = x.shape
  Ch = p["w1"].shape[0]
  Cout = p["w3"].shape[0]
  Fr = p["dft_re"].shape[0]
  FE = F * E

  # One NCHW batch element is already the (C, F*E) slab the kernel wants, so
  # the wrapper is reshape-only (no transpose / cast HBM passes).  FE is the
  # full last dim of every block, so BlockSpecs are always legal; FE % 128 == 0
  # additionally keeps all stores unmasked (true for the shapes used here).
  xk = x.reshape(B, Cin, FE)

  weights = [p["w1"], p["t1"], p["dft_re"], p["dft_im"], p["w2_re"],
             p["w2_im"], p["b2"], p["idft_re"], p["idft_im"], p["w3"]]

  def _wspec(a):
    # Weights are small and stay resident in VMEM across grid steps.
    return pl.BlockSpec(a.shape, lambda b, _nd=a.ndim: (0,) * _nd)

  in_specs = [pl.BlockSpec((None, Cin, FE), lambda b: (b, 0, 0))]
  in_specs += [_wspec(a) for a in weights]

  flops = 2 * B * (Ch * Cin * FE            # conv1
                   + 2 * Fr * F * Ch * E    # rfft (re + im)
                   + 2 * (2 * Ch) * Ch * Fr * E   # inter_conv (re + im)
                   + 2 * F * Fr * Ch * E    # irfft (re + im)
                   + Cout * Ch * FE)        # conv2
  bytes_accessed = (B * FE * (Cin * 4 + Cout * np.dtype(out_dtype).itemsize)
                    + sum(int(a.size) * a.dtype.itemsize for a in weights))

  out = pl.pallas_call(
      functools.partial(_spectral_transform_kernel, F=F, E=E),
      out_shape=jax.ShapeDtypeStruct((B, Cout, FE), out_dtype),
      grid_spec=pltpu.PrefetchScalarGridSpec(
          num_scalar_prefetch=0,
          grid=(B,),
          in_specs=in_specs,
          out_specs=pl.BlockSpec((None, Cout, FE), lambda b: (b, 0, 0)),
      ),
      compiler_params=pltpu.CompilerParams(
          dimension_semantics=("parallel",),
          # Modest explicit budget: well above this kernel's needs, within the
          # scoped limits of v5e/v6e/v7x alike.
          vmem_limit_bytes=32 * 1024 * 1024,
      ),
      cost_estimate=pl.CostEstimate(
          flops=int(flops), transcendentals=0,
          bytes_accessed=int(bytes_accessed)),
  )(xk, *weights)
  return out.reshape(B, Cout, F, E)


# ----------------------------------------------------------------------------
# Parameter construction (deterministic, synthetic) + DFT matrices.
# ----------------------------------------------------------------------------
def _rfft_matrices(N):
  k = np.arange(N // 2 + 1, dtype=np.float64)[:, None]
  n = np.arange(N, dtype=np.float64)[None, :]
  ang = 2.0 * np.pi * k * n / N
  scale = 1.0 / np.sqrt(N)                       # norm='ortho'
  return np.cos(ang) * scale, -np.sin(ang) * scale   # (Fr, F) each


def _irfft_matrices(N):
  Fr = N // 2 + 1
  n = np.arange(N, dtype=np.float64)[:, None]
  k = np.arange(Fr, dtype=np.float64)[None, :]
  ang = 2.0 * np.pi * k * n / N
  w = np.where((k == 0) | ((N % 2 == 0) & (k == N // 2)), 1.0, 2.0)
  scale = 1.0 / np.sqrt(N)                       # norm='ortho'
  return w * np.cos(ang) * scale, -w * np.sin(ang) * scale   # (F, Fr) each


def _fold_bn(gamma, beta, mean, var):
  s = gamma / jnp.sqrt(var + _EPS)
  t = beta - mean * s
  return s, t


def make_params(key, in_channels, out_channels, F, E):
  del E  # DFT matrices act only on the freq axis
  Ch = out_channels // 2
  ks = jax.random.split(key, 12)
  f32 = jnp.float32
  bf16 = jnp.bfloat16

  # conv1: Conv2d(Cin -> Ch, k=1, bias=False) + BN(Ch) + ReLU
  w1 = (0.3 * jax.random.normal(ks[0], (Ch, in_channels))).astype(f32)
  g1 = (1.0 + 0.1 * jax.random.normal(ks[1], (Ch,))).astype(f32)
  b1 = (0.1 * jax.random.normal(ks[2], (Ch,))).astype(f32)
  m1 = (0.05 * jax.random.normal(ks[3], (Ch,))).astype(f32)
  v1 = jax.random.uniform(ks[4], (Ch,), minval=0.5, maxval=1.5).astype(f32)
  s1, t1 = _fold_bn(g1, b1, m1, v1)

  # FourierUnit inter_conv: Conv2d(2Ch -> 2Ch, k=1, bias=True) + BN(2Ch) + ReLU
  w2 = (0.3 * jax.random.normal(ks[5], (2 * Ch, 2 * Ch))).astype(f32)
  b2 = (0.1 * jax.random.normal(ks[6], (2 * Ch,))).astype(f32)
  g2 = (1.0 + 0.1 * jax.random.normal(ks[7], (2 * Ch,))).astype(f32)
  bb2 = (0.1 * jax.random.normal(ks[8], (2 * Ch,))).astype(f32)
  m2 = (0.05 * jax.random.normal(ks[9], (2 * Ch,))).astype(f32)
  v2 = jax.random.uniform(ks[10], (2 * Ch,), minval=0.5, maxval=1.5).astype(f32)
  s2, t2 = _fold_bn(g2, bb2, m2, v2)

  # conv2: Conv2d(Ch -> Cout, k=1, bias=False)
  w3 = (0.3 * jax.random.normal(ks[11], (out_channels, Ch))).astype(f32)

  # De-kron'ed rFFT / irFFT matrices (norm='ortho'), used as left-mults.
  Cr, Ci = _rfft_matrices(F)                     # (Fr, F)
  Dr, Di = _irfft_matrices(F)                    # (F, Fr)

  # Permute inter_conv channels from PyTorch's interleaved [re, im, re, ...]
  # order to [all_real | all_imag], fold BN, then split column-wise so the
  # kernel uses two accumulated dots instead of a concatenate.
  perm = np.concatenate([2 * np.arange(Ch), 2 * np.arange(Ch) + 1])
  w2p = np.asarray(w2)[np.ix_(perm, perm)]
  b2p = np.asarray(b2)[perm]
  s2p = np.asarray(s2)[perm]
  t2p = np.asarray(t2)[perm]
  w2f = s2p[:, None] * w2p
  b2f = s2p * b2p + t2p
  w1f = np.asarray(s1)[:, None] * np.asarray(w1)

  params = dict(
      w1=jnp.asarray(w1f, bf16),
      t1=jnp.asarray(t1).reshape(Ch, 1).astype(f32),
      dft_re=jnp.asarray(Cr, bf16),
      dft_im=jnp.asarray(Ci, bf16),
      w2_re=jnp.asarray(w2f[:, :Ch], bf16),
      w2_im=jnp.asarray(w2f[:, Ch:], bf16),
      b2=jnp.asarray(b2f).reshape(2 * Ch, 1).astype(f32),
      idft_re=jnp.asarray(Dr, bf16),
      idft_im=jnp.asarray(Di, bf16),
      w3=jnp.asarray(w3, bf16),
  )
  raw = dict(w1=w1, s1=s1, t1=t1, w2=w2, b2=b2, s2=s2, t2=t2, w3=w3)
  return params, raw


# ----------------------------------------------------------------------------
# Plain-JAX reference mirroring the PyTorch forward (for verification).
# ----------------------------------------------------------------------------
def reference_forward(x, raw, F):
  B, Cin, _, E = x.shape
  Ch = raw["w1"].shape[0]
  hi = jax.lax.Precision.HIGHEST

  y = jnp.einsum("oc,bcfe->bofe", raw["w1"], x, precision=hi)
  res = jnp.maximum(y * raw["s1"].reshape(1, Ch, 1, 1)
                    + raw["t1"].reshape(1, Ch, 1, 1), 0.0)

  ft = jnp.fft.rfft(res, axis=2, norm="ortho")                 # (B,Ch,Fr,E)
  Fr = ft.shape[2]
  st = jnp.stack((ft.real, ft.imag), axis=2).reshape(B, 2 * Ch, Fr, E)
  z = jnp.einsum("oc,bcke->boke", raw["w2"], st, precision=hi)
  z = z + raw["b2"].reshape(1, -1, 1, 1)
  z = jnp.maximum(z * raw["s2"].reshape(1, -1, 1, 1)
                  + raw["t2"].reshape(1, -1, 1, 1), 0.0)
  z = z.reshape(B, Ch, 2, Fr, E)
  comp = z[:, :, 0] + 1j * z[:, :, 1]
  rec = jnp.fft.irfft(comp, n=F, axis=2, norm="ortho")
  out = rec + res
  return jnp.einsum("oc,bcfe->bofe", raw["w3"], out, precision=hi)


if __name__ == "__main__":
  B, Cin, Cout, F, E = 2, 4, 4, 16, 16

  key = jax.random.PRNGKey(0)
  k_x, k_p = jax.random.split(key)
  x = jax.random.normal(k_x, (B, Cin, F, E), dtype=jnp.float32)
  params, raw = make_params(k_p, Cin, Cout, F, E)

  out = jax.block_until_ready(spectral_transform_pallas(x, params))
  ref = jax.block_until_ready(reference_forward(x, raw, F))

  out_np = np.asarray(out)
  ref_np = np.asarray(ref)
  # Kernel matmuls use bf16 inputs with f32 accumulation, so agreement with
  # the f32 reference is at the few-percent-of-output-scale level.
  atol = 0.05 * float(np.max(np.abs(ref_np)))
  np.testing.assert_allclose(out_np, ref_np, rtol=0.05, atol=atol)

  print("KERNEL_OK")
</pallas_src>

<mosaic_0001>
module attributes {stable_mosaic.version = 11 : i64} {
  func.func @_spectral_transform_kernel(%arg0: i32, %arg1: memref<1x4x256xf32, #tpu.memory_space<vmem>>, %arg2: memref<2x4xbf16, #tpu.memory_space<vmem>>, %arg3: memref<2x1xf32, #tpu.memory_space<vmem>>, %arg4: memref<9x16xbf16, #tpu.memory_space<vmem>>, %arg5: memref<9x16xbf16, #tpu.memory_space<vmem>>, %arg6: memref<4x2xbf16, #tpu.memory_space<vmem>>, %arg7: memref<4x2xbf16, #tpu.memory_space<vmem>>, %arg8: memref<4x1xf32, #tpu.memory_space<vmem>>, %arg9: memref<16x9xbf16, #tpu.memory_space<vmem>>, %arg10: memref<16x9xbf16, #tpu.memory_space<vmem>>, %arg11: memref<4x2xbf16, #tpu.memory_space<vmem>>, %arg12: memref<1x4x256xf32, #tpu.memory_space<vmem>>) attributes {dimension_semantics = [#tpu.dimension_semantics<parallel>], iteration_bounds = array<i64: 2>, scalar_prefetch = 0 : i64, scratch_operands = 0 : i64, tpu.core_type = #tpu.core_type<tc>, window_params = [{transform_indices = @transform_0, window_bounds = array<i64: 1, 4, 256>}, {pipeline_mode = #tpu.pipeline_mode<synchronous>, transform_indices = @transform_1, window_bounds = array<i64: 2, 4>}, {pipeline_mode = #tpu.pipeline_mode<synchronous>, transform_indices = @transform_2, window_bounds = array<i64: 2, 1>}, {pipeline_mode = #tpu.pipeline_mode<synchronous>, transform_indices = @transform_3, window_bounds = array<i64: 9, 16>}, {pipeline_mode = #tpu.pipeline_mode<synchronous>, transform_indices = @transform_4, window_bounds = array<i64: 9, 16>}, {pipeline_mode = #tpu.pipeline_mode<synchronous>, transform_indices = @transform_5, window_bounds = array<i64: 4, 2>}, {pipeline_mode = #tpu.pipeline_mode<synchronous>, transform_indices = @transform_6, window_bounds = array<i64: 4, 2>}, {pipeline_mode = #tpu.pipeline_mode<synchronous>, transform_indices = @transform_7, window_bounds = array<i64: 4, 1>}, {pipeline_mode = #tpu.pipeline_mode<synchronous>, transform_indices = @transform_8, window_bounds = array<i64: 16, 9>}, {pipeline_mode = #tpu.pipeline_mode<synchronous>, transform_indices = @transform_9, window_bounds = array<i64: 16, 9>}, {pipeline_mode = #tpu.pipeline_mode<synchronous>, transform_indices = @transform_10, window_bounds = array<i64: 4, 2>}, {transform_indices = @transform_11, window_bounds = array<i64: 1, 4, 256>}]} {
    %c0 = arith.constant 0 : index
    %c0_0 = arith.constant 0 : index
    %c0_1 = arith.constant 0 : index
    %0 = vector.load %arg1[%c0, %c0_0, %c0_1] : memref<1x4x256xf32, #tpu.memory_space<vmem>>, vector<1x4x256xf32>
    %1 = vector.shape_cast %0 : vector<1x4x256xf32> to vector<4x256xf32>
    %2 = arith.truncf %1 : vector<4x256xf32> to vector<4x256xbf16>
    %c0_2 = arith.constant 0 : index
    %c0_3 = arith.constant 0 : index
    %3 = vector.load %arg2[%c0_2, %c0_3] : memref<2x4xbf16, #tpu.memory_space<vmem>>, vector<2x4xbf16>
    %cst = arith.constant dense<0.000000e+00> : vector<2x256xf32>
    %4 = tpu.matmul %3, %2, %cst {dimension_numbers = #tpu.dot_dimension_numbers<[1], [0], [0], [1], [0, 0, 1, 1], [], []>} : vector<2x4xbf16>, vector<4x256xbf16>, vector<2x256xf32> -> vector<2x256xf32>
    %c0_4 = arith.constant 0 : index
    %c0_5 = arith.constant 0 : index
    %5 = vector.load %arg3[%c0_4, %c0_5] : memref<2x1xf32, #tpu.memory_space<vmem>>, vector<2x1xf32>
    %6 = vector.broadcast %5 : vector<2x1xf32> to vector<2x256xf32>
    %7 = arith.addf %4, %6 : vector<2x256xf32>
    %cst_6 = arith.constant 0.000000e+00 : f32
    %8 = vector.broadcast %cst_6 : f32 to vector<2x256xf32>
    %9 = arith.maximumf %7, %8 : vector<2x256xf32>
    %10 = arith.truncf %9 : vector<2x256xf32> to vector<2x256xbf16>
    %11 = vector.shape_cast %10 : vector<2x256xbf16> to vector<2x16x16xbf16>
    %12 = tpu.transpose %11, [1, 0, 2] : vector<2x16x16xbf16> -> vector<16x2x16xbf16>
    %13 = vector.shape_cast %12 : vector<16x2x16xbf16> to vector<16x32xbf16>
    %c0_7 = arith.constant 0 : index
    %c0_8 = arith.constant 0 : index
    %14 = vector.load %arg4[%c0_7, %c0_8] : memref<9x16xbf16, #tpu.memory_space<vmem>>, vector<9x16xbf16>
    %cst_9 = arith.constant dense<0.000000e+00> : vector<9x32xf32>
    %15 = tpu.matmul %14, %13, %cst_9 {dimension_numbers = #tpu.dot_dimension_numbers<[1], [0], [0], [1], [0, 0, 1, 1], [], []>} : vector<9x16xbf16>, vector<16x32xbf16>, vector<9x32xf32> -> vector<9x32xf32>
    %c0_10 = arith.constant 0 : index
    %c0_11 = arith.constant 0 : index
    %16 = vector.load %arg5[%c0_10, %c0_11] : memref<9x16xbf16, #tpu.memory_space<vmem>>, vector<9x16xbf16>
    %cst_12 = arith.constant dense<0.000000e+00> : vector<9x32xf32>
    %17 = tpu.matmul %16, %13, %cst_12 {dimension_numbers = #tpu.dot_dimension_numbers<[1], [0], [0], [1], [0, 0, 1, 1], [], []>} : vector<9x16xbf16>, vector<16x32xbf16>, vector<9x32xf32> -> vector<9x32xf32>
    %18 = arith.truncf %15 : vector<9x32xf32> to vector<9x32xbf16>
    %19 = vector.shape_cast %18 : vector<9x32xbf16> to vector<9x2x16xbf16>
    %20 = tpu.transpose %19, [1, 0, 2] : vector<9x2x16xbf16> -> vector<2x9x16xbf16>
    %21 = vector.shape_cast %20 : vector<2x9x16xbf16> to vector<2x144xbf16>
    %22 = arith.truncf %17 : vector<9x32xf32> to vector<9x32xbf16>
    %23 = vector.shape_cast %22 : vector<9x32xbf16> to vector<9x2x16xbf16>
    %24 = tpu.transpose %23, [1, 0, 2] : vector<9x2x16xbf16> -> vector<2x9x16xbf16>
    %25 = vector.shape_cast %24 : vector<2x9x16xbf16> to vector<2x144xbf16>
    %c0_13 = arith.constant 0 : index
    %c0_14 = arith.constant 0 : index
    %26 = vector.load %arg6[%c0_13, %c0_14] : memref<4x2xbf16, #tpu.memory_space<vmem>>, vector<4x2xbf16>
    %cst_15 = arith.constant dense<0.000000e+00> : vector<4x144xf32>
    %27 = tpu.matmul %26, %21, %cst_15 {dimension_numbers = #tpu.dot_dimension_numbers<[1], [0], [0], [1], [0, 0, 1, 1], [], []>} : vector<4x2xbf16>, vector<2x144xbf16>, vector<4x144xf32> -> vector<4x144xf32>
    %c0_16 = arith.constant 0 : index
    %c0_17 = arith.constant 0 : index
    %28 = vector.load %arg7[%c0_16, %c0_17] : memref<4x2xbf16, #tpu.memory_space<vmem>>, vector<4x2xbf16>
    %cst_18 = arith.constant dense<0.000000e+00> : vector<4x144xf32>
    %29 = tpu.matmul %28, %25, %cst_18 {dimension_numbers = #tpu.dot_dimension_numbers<[1], [0], [0], [1], [0, 0, 1, 1], [], []>} : vector<4x2xbf16>, vector<2x144xbf16>, vector<4x144xf32> -> vector<4x144xf32>
    %30 = arith.addf %27, %29 : vector<4x144xf32>
    %c0_19 = arith.constant 0 : index
    %c0_20 = arith.constant 0 : index
    %31 = vector.load %arg8[%c0_19, %c0_20] : memref<4x1xf32, #tpu.memory_space<vmem>>, vector<4x1xf32>
    %32 = vector.broadcast %31 : vector<4x1xf32> to vector<4x144xf32>
    %33 = arith.addf %30, %32 : vector<4x144xf32>
    %cst_21 = arith.constant 0.000000e+00 : f32
    %34 = vector.broadcast %cst_21 : f32 to vector<4x144xf32>
    %35 = arith.maximumf %33, %34 : vector<4x144xf32>
    %36 = arith.truncf %35 : vector<4x144xf32> to vector<4x144xbf16>
    %37 = vector.extract_strided_slice %36 {offsets = [0, 0], sizes = [2, 144], strides = [1, 1]} : vector<4x144xbf16> to vector<2x144xbf16>
    %38 = vector.shape_cast %37 : vector<2x144xbf16> to vector<2x9x16xbf16>
    %39 = tpu.transpose %38, [1, 0, 2] : vector<2x9x16xbf16> -> vector<9x2x16xbf16>
    %40 = vector.shape_cast %39 : vector<9x2x16xbf16> to vector<9x32xbf16>
    %41 = vector.extract_strided_slice %36 {offsets = [2, 0], sizes = [2, 144], strides = [1, 1]} : vector<4x144xbf16> to vector<2x144xbf16>
    %42 = vector.shape_cast %41 : vector<2x144xbf16> to vector<2x9x16xbf16>
    %43 = tpu.transpose %42, [1, 0, 2] : vector<2x9x16xbf16> -> vector<9x2x16xbf16>
    %44 = vector.shape_cast %43 : vector<9x2x16xbf16> to vector<9x32xbf16>
    %c0_22 = arith.constant 0 : index
    %c0_23 = arith.constant 0 : index
    %45 = vector.load %arg9[%c0_22, %c0_23] : memref<16x9xbf16, #tpu.memory_space<vmem>>, vector<16x9xbf16>
    %cst_24 = arith.constant dense<0.000000e+00> : vector<16x32xf32>
    %46 = tpu.matmul %45, %40, %cst_24 {dimension_numbers = #tpu.dot_dimension_numbers<[1], [0], [0], [1], [0, 0, 1, 1], [], []>} : vector<16x9xbf16>, vector<9x32xbf16>, vector<16x32xf32> -> vector<16x32xf32>
    %c0_25 = arith.constant 0 : index
    %c0_26 = arith.constant 0 : index
    %47 = vector.load %arg10[%c0_25, %c0_26] : memref<16x9xbf16, #tpu.memory_space<vmem>>, vector<16x9xbf16>
    %cst_27 = arith.constant dense<0.000000e+00> : vector<16x32xf32>
    %48 = tpu.matmul %47, %44, %cst_27 {dimension_numbers = #tpu.dot_dimension_numbers<[1], [0], [0], [1], [0, 0, 1, 1], [], []>} : vector<16x9xbf16>, vector<9x32xbf16>, vector<16x32xf32> -> vector<16x32xf32>
    %49 = arith.addf %46, %48 : vector<16x32xf32>
    %50 = arith.truncf %49 : vector<16x32xf32> to vector<16x32xbf16>
    %51 = vector.shape_cast %50 : vector<16x32xbf16> to vector<16x2x16xbf16>
    %52 = tpu.transpose %51, [1, 0, 2] : vector<16x2x16xbf16> -> vector<2x16x16xbf16>
    %53 = vector.shape_cast %52 : vector<2x16x16xbf16> to vector<2x256xbf16>
    %54 = arith.addf %53, %10 : vector<2x256xbf16>
    %c0_28 = arith.constant 0 : index
    %c0_29 = arith.constant 0 : index
    %55 = vector.load %arg11[%c0_28, %c0_29] : memref<4x2xbf16, #tpu.memory_space<vmem>>, vector<4x2xbf16>
    %cst_30 = arith.constant dense<0.000000e+00> : vector<4x256xf32>
    %56 = tpu.matmul %55, %54, %cst_30 {dimension_numbers = #tpu.dot_dimension_numbers<[1], [0], [0], [1], [0, 0, 1, 1], [], []>} : vector<4x2xbf16>, vector<2x256xbf16>, vector<4x256xf32> -> vector<4x256xf32>
    %c0_31 = arith.constant 0 : index
    %c0_32 = arith.constant 0 : index
    %c0_33 = arith.constant 0 : index
    %57 = vector.load %arg12[%c0_31, %c0_32, %c0_33] : memref<1x4x256xf32, #tpu.memory_space<vmem>>, vector<1x4x256xf32>
    %58 = vector.shape_cast %57 : vector<1x4x256xf32> to vector<4x256xf32>
    %59 = vector.shape_cast %56 : vector<4x256xf32> to vector<1x4x256xf32>
    tpu.vector_store %arg12[%c0_31, %c0_32, %c0_33], %59 {strides = array<i32>} : memref<1x4x256xf32, #tpu.memory_space<vmem>>, vector<1x4x256xf32>,
    return
  }
  func.func @transform_0(%arg0: i32) -> (i32, i32, i32) {
    %c0_i32 = arith.constant 0 : i32
    %c0_i32_0 = arith.constant 0 : i32
    %c0_i32_1 = arith.constant 0 : i32
    return %arg0, %c0_i32, %c0_i32_0 : i32, i32, i32
  }
  func.func @transform_1(%arg0: i32) -> (i32, i32) {
    %c0_i32 = arith.constant 0 : i32
    %c0_i32_0 = arith.constant 0 : i32
    %c0_i32_1 = arith.constant 0 : i32
    return %c0_i32, %c0_i32_0 : i32, i32
  }
  func.func @transform_2(%arg0: i32) -> (i32, i32) {
    %c0_i32 = arith.constant 0 : i32
    %c0_i32_0 = arith.constant 0 : i32
    %c0_i32_1 = arith.constant 0 : i32
    return %c0_i32, %c0_i32_0 : i32, i32
  }
  func.func @transform_3(%arg0: i32) -> (i32, i32) {
    %c0_i32 = arith.constant 0 : i32
    %c0_i32_0 = arith.constant 0 : i32
    %c0_i32_1 = arith.constant 0 : i32
    return %c0_i32, %c0_i32_0 : i32, i32
  }
  func.func @transform_4(%arg0: i32) -> (i32, i32) {
    %c0_i32 = arith.constant 0 : i32
    %c0_i32_0 = arith.constant 0 : i32
    %c0_i32_1 = arith.constant 0 : i32
    return %c0_i32, %c0_i32_0 : i32, i32
  }
  func.func @transform_5(%arg0: i32) -> (i32, i32) {
    %c0_i32 = arith.constant 0 : i32
    %c0_i32_0 = arith.constant 0 : i32
    %c0_i32_1 = arith.constant 0 : i32
    return %c0_i32, %c0_i32_0 : i32, i32
  }
  func.func @transform_6(%arg0: i32) -> (i32, i32) {
    %c0_i32 = arith.constant 0 : i32
    %c0_i32_0 = arith.constant 0 : i32
    %c0_i32_1 = arith.constant 0 : i32
    return %c0_i32, %c0_i32_0 : i32, i32
  }
  func.func @transform_7(%arg0: i32) -> (i32, i32) {
    %c0_i32 = arith.constant 0 : i32
    %c0_i32_0 = arith.constant 0 : i32
    %c0_i32_1 = arith.constant 0 : i32
    return %c0_i32, %c0_i32_0 : i32, i32
  }
  func.func @transform_8(%arg0: i32) -> (i32, i32) {
    %c0_i32 = arith.constant 0 : i32
    %c0_i32_0 = arith.constant 0 : i32
    %c0_i32_1 = arith.constant 0 : i32
    return %c0_i32, %c0_i32_0 : i32, i32
  }
  func.func @transform_9(%arg0: i32) -> (i32, i32) {
    %c0_i32 = arith.constant 0 : i32
    %c0_i32_0 = arith.constant 0 : i32
    %c0_i32_1 = arith.constant 0 : i32
    return %c0_i32, %c0_i32_0 : i32, i32
  }
  func.func @transform_10(%arg0: i32) -> (i32, i32) {
    %c0_i32 = arith.constant 0 : i32
    %c0_i32_0 = arith.constant 0 : i32
    %c0_i32_1 = arith.constant 0 : i32
    return %c0_i32, %c0_i32_0 : i32, i32
  }
  func.func @transform_11(%arg0: i32) -> (i32, i32, i32) {
    %c0_i32 = arith.constant 0 : i32
    %c0_i32_0 = arith.constant 0 : i32
    %c0_i32_1 = arith.constant 0 : i32
    return %arg0, %c0_i32, %c0_i32_0 : i32, i32, i32
  }
}

</mosaic_0001>

<llo_original>
// kernel: tpu_custom_call.1
$region0: #{tpu_custom_call.1}
  #allocation0 [shape = 'u32[]', space=smem, size = 0x4, offset = 0x4, fixed_abs, tag = 'smem constant byte address 0x4 - core index']
  #allocation1 [shape = 'u32[144,128]{1,0:T(1,128)}', space=vmem, size = 0x12000, scoped, tag = 'internal scratch']
  %s0 = inlined_call_operand.vmem [shape: f32[2,4,256], index: 0, kind: input, shape index: {}]
  %s1 = inlined_call_operand.hbm [shape: bf16[2,4], index: 1, kind: input, shape index: {}]
  %s2 = inlined_call_operand.vmem [shape: f32[2,1], index: 2, kind: input, shape index: {}]
  %s3 = inlined_call_operand.hbm [shape: bf16[9,16], index: 3, kind: input, shape index: {}]
  %s4 = inlined_call_operand.vmem [shape: bf16[9,16], index: 4, kind: input, shape index: {}]
  %s5 = inlined_call_operand.vmem [shape: bf16[4,2], index: 5, kind: input, shape index: {}]
  %s6 = inlined_call_operand.vmem [shape: bf16[4,2], index: 6, kind: input, shape index: {}]
  %s7 = inlined_call_operand.vmem [shape: f32[4,1], index: 7, kind: input, shape index: {}]
  %s8 = inlined_call_operand.hbm [shape: bf16[16,9], index: 8, kind: input, shape index: {}]
  %s9 = inlined_call_operand.vmem [shape: bf16[16,9], index: 9, kind: input, shape index: {}]
  %s10 = inlined_call_operand.vmem [shape: bf16[4,2], index: 10, kind: input, shape index: {}]
  %s11 = inlined_call_operand.hbm [shape: f32[2,4,256], index: 11, kind: output, shape index: {}]
  %s12 = sld [smem:[#allocation0]]
  $region89: #{tpu_custom_call.1} parent=0
    _
  %s14 = ssub.s32 1, %s12
  %s15 = scalar_select 0, %s14, %s12
  $region1: #{tpu_custom_call.1} parent=0
    #allocation2 [shape = 'u8[512]{0}', space=vmem, size = 0x400, scoped, tag = 'input window, operand 1, single buffered']
    #allocation3 [shape = 's32[2]{0}', space=sflag, size = 0x8, scoped, tag = 'scoped memory for tpu_custom_call.1']
    #allocation4 [shape = 's32[2]{0}', space=sflag, size = 0x8, scoped, tag = 'scoped memory for tpu_custom_call.1']
    #allocation5 [shape = 'u8[4096]{0}', space=vmem, size = 0x1000, scoped, tag = 'input window, operand 3, single buffered']
    #allocation6 [shape = 's32[1]{0}', space=sflag, size = 0x4, scoped, tag = 'scoped memory for tpu_custom_call.1']
    #allocation7 [shape = 'u8[4096]{0}', space=vmem, size = 0x1000, scoped, tag = 'input window, operand 8, single buffered']
    #allocation8 [shape = 'u8[8192]{0}', space=vmem, size = 0x2000, scoped, tag = 'output window, operand 0']
    %16 = vsyncpa [#allocation3], 0
    %17 = vsyncpa [#allocation6], 0
    %18 = vsyncpa [#allocation4], 0
    %s19 = scalar_lea.sflag [#allocation4], 1
    %20 = vsyncpa %s19, 0
    loop: start=0, step=1, limit=4
    $region2: #{tpu_custom_call.1} parent=1 // loop_pre_header
      _
    $region3: #{tpu_custom_call.1} parent=1 // loop_header
      %s22 = sphi 0, %s26
      %p23 = scmp.ge.s32.totalorder %s22, 4
      %s32 = sphi 0, %s34
      %s35 = sphi 0, %s32
      %s36 = sphi 0, %s35
      %s52 = sphi 0, %s36
      %s56 = sphi 0, %s56
      %s58 = sphi 0, %s56
      %s59 = sphi 0, %s58
      %s73 = sphi 0, %s59
      %s77 = sphi 0, %s77
      %s79 = sphi 0, %s77
      %s80 = sphi 0, %s79
      %s94 = sphi 0, %s80
      %s98 = sphi 0, %s98
      %s100 = sphi 0, %s98
      %s101 = sphi 0, %s100
      %s115 = sphi 0, %s101
      %s119 = sphi 0, %s119
      %s121 = sphi 0, %s119
      %s122 = sphi 0, %s121
      %s136 = sphi 0, %s122
      %s140 = sphi 0, %s140
      %s142 = sphi 0, %s140
      %s143 = sphi 0, %s142
      %s157 = sphi 0, %s143
      %s161 = sphi 0, %s161
      %s163 = sphi 0, %s161
      %s164 = sphi 0, %s163
      %s178 = sphi 0, %s164
      %s182 = sphi 0, %s182
      %s184 = sphi 0, %s182
      %s185 = sphi 0, %s184
      %s199 = sphi 0, %s185
      %s203 = sphi 0, %s203
      %s205 = sphi 0, %s203
      %s206 = sphi 0, %s205
      %s220 = sphi 0, %s206
      %s224 = sphi 0, %s224
      %s226 = sphi 0, %s224
      %s227 = sphi 0, %s226
      %s241 = sphi 0, %s227
      %s245 = sphi 0, %s245
      %s247 = sphi 0, %s245
      %s248 = sphi 0, %s247
      %s262 = sphi 0, %s248
      %s268 = sphi 0, %s270
      %s271 = sphi 0, %s268
      %s272 = sphi 0, %s271
      %s288 = sphi 0, %s272
    $region4: #{tpu_custom_call.1} parent=1 // loop_header_branch
      %25 = sbr.rel (%p23) target = $region8
    $region5: #{tpu_custom_call.1} parent=1 // loop_body
      %s27 = ssub.s32 %s22, 1
      %s28 = ssub.s32 %s22, 2
      %s29 = sadd.s32 %s22, 1
      %s30 = ssub.s32 %s22, %s29
      %p31 = scmp.eq.s32.totalorder %s30, 0
      %s33 = sadd.s32 %s32, 1
      %s34 = scalar_select %p31, %s32, %s33
      %p37 = pneg %p31
      %p38 = scmp.eq.s32.totalorder %s22, 1
      %p39 = por %p37, %p38
      %p40 = scmp.ne.s32.totalorder %s32, %s35
      %p41 = scmp.eq.s32.totalorder %s22, 0
      %p42 = por %p40, %p41
      %p43 = scmp.ne.s32.totalorder %s32, %s35
      %p44 = scmp.eq.s32.totalorder %s27, 1
      %p45 = por %p43, %p44
      %p46 = scmp.ne.s32.totalorder %s35, %s36
      %p47 = scmp.eq.s32.totalorder %s27, 0
      %p48 = por %p46, %p47
      %p49 = scmp.ne.s32.totalorder %s35, %s36
      %p50 = scmp.eq.s32.totalorder %s28, 1
      %p51 = por %p49, %p50
      %p53 = scmp.ne.s32.totalorder %s36, %s52
      %p54 = scmp.eq.s32.totalorder %s28, 0
      %p55 = por %p53, %p54
      %s57 = sadd.s32 %s56, 1
      %p60 = scmp.eq.s32.totalorder %s22, 1
      %p61 = scmp.ne.s32.totalorder %s56, %s58
      %p62 = scmp.eq.s32.totalorder %s22, 0
      %p63 = por %p61, %p62
      %p64 = scmp.ne.s32.totalorder %s56, %s58
      %p65 = scmp.eq.s32.totalorder %s27, 1
      %p66 = por %p64, %p65
      %p67 = scmp.ne.s32.totalorder %s58, %s59
      %p68 = scmp.eq.s32.totalorder %s27, 0
      %p69 = por %p67, %p68
      %p70 = scmp.ne.s32.totalorder %s58, %s59
      %p71 = scmp.eq.s32.totalorder %s28, 1
      %p72 = por %p70, %p71
      %p74 = scmp.ne.s32.totalorder %s59, %s73
      %p75 = scmp.eq.s32.totalorder %s28, 0
      %p76 = por %p74, %p75
      %s78 = sadd.s32 %s77, 1
      %p81 = scmp.eq.s32.totalorder %s22, 1
      %p82 = scmp.ne.s32.totalorder %s77, %s79
      %p83 = scmp.eq.s32.totalorder %s22, 0
      %p84 = por %p82, %p83
      %p85 = scmp.ne.s32.totalorder %s77, %s79
      %p86 = scmp.eq.s32.totalorder %s27, 1
      %p87 = por %p85, %p86
      %p88 = scmp.ne.s32.totalorder %s79, %s80
      %p89 = scmp.eq.s32.totalorder %s27, 0
      %p90 = por %p88, %p89
      %p91 = scmp.ne.s32.totalorder %s79, %s80
      %p92 = scmp.eq.s32.totalorder %s28, 1
      %p93 = por %p91, %p92
      %p95 = scmp.ne.s32.totalorder %s80, %s94
      %p96 = scmp.eq.s32.totalorder %s28, 0
      %p97 = por %p95, %p96
      %s99 = sadd.s32 %s98, 1
      %p102 = scmp.eq.s32.totalorder %s22, 1
      %p103 = scmp.ne.s32.totalorder %s98, %s100
      %p104 = scmp.eq.s32.totalorder %s22, 0
      %p105 = por %p103, %p104
      %p106 = scmp.ne.s32.totalorder %s98, %s100
      %p107 = scmp.eq.s32.totalorder %s27, 1
      %p108 = por %p106, %p107
      %p109 = scmp.ne.s32.totalorder %s100, %s101
      %p110 = scmp.eq.s32.totalorder %s27, 0
      %p111 = por %p109, %p110
      %p112 = scmp.ne.s32.totalorder %s100, %s101
      %p113 = scmp.eq.s32.totalorder %s28, 1
      %p114 = por %p112, %p113
      %p116 = scmp.ne.s32.totalorder %s101, %s115
      %p117 = scmp.eq.s32.totalorder %s28, 0
      %p118 = por %p116, %p117
      %s120 = sadd.s32 %s119, 1
      %p123 = scmp.eq.s32.totalorder %s22, 1
      %p124 = scmp.ne.s32.totalorder %s119, %s121
      %p125 = scmp.eq.s32.totalorder %s22, 0
      %p126 = por %p124, %p125
      %p127 = scmp.ne.s32.totalorder %s119, %s121
      %p128 = scmp.eq.s32.totalorder %s27, 1
      %p129 = por %p127, %p128
      %p130 = scmp.ne.s32.totalorder %s121, %s122
      %p131 = scmp.eq.s32.totalorder %s27, 0
      %p132 = por %p130, %p131
      %p133 = scmp.ne.s32.totalorder %s121, %s122
      %p134 = scmp.eq.s32.totalorder %s28, 1
      %p135 = por %p133, %p134
      %p137 = scmp.ne.s32.totalorder %s122, %s136
      %p138 = scmp.eq.s32.totalorder %s28, 0
      %p139 = por %p137, %p138
      %s141 = sadd.s32 %s140, 1
      %p144 = scmp.eq.s32.totalorder %s22, 1
      %p145 = scmp.ne.s32.totalorder %s140, %s142
      %p146 = scmp.eq.s32.totalorder %s22, 0
      %p147 = por %p145, %p146
      %p148 = scmp.ne.s32.totalorder %s140, %s142
      %p149 = scmp.eq.s32.totalorder %s27, 1
      %p150 = por %p148, %p149
      %p151 = scmp.ne.s32.totalorder %s142, %s143
      %p152 = scmp.eq.s32.totalorder %s27, 0
      %p153 = por %p151, %p152
      %p154 = scmp.ne.s32.totalorder %s142, %s143
      %p155 = scmp.eq.s32.totalorder %s28, 1
      %p156 = por %p154, %p155
      %p158 = scmp.ne.s32.totalorder %s143, %s157
      %p159 = scmp.eq.s32.totalorder %s28, 0
      %p160 = por %p158, %p159
      %s162 = sadd.s32 %s161, 1
      %p165 = scmp.eq.s32.totalorder %s22, 1
      %p166 = scmp.ne.s32.totalorder %s161, %s163
      %p167 = scmp.eq.s32.totalorder %s22, 0
      %p168 = por %p166, %p167
      %p169 = scmp.ne.s32.totalorder %s161, %s163
      %p170 = scmp.eq.s32.totalorder %s27, 1
      %p171 = por %p169, %p170
      %p172 = scmp.ne.s32.totalorder %s163, %s164
      %p173 = scmp.eq.s32.totalorder %s27, 0
      %p174 = por %p172, %p173
      %p175 = scmp.ne.s32.totalorder %s163, %s164
      %p176 = scmp.eq.s32.totalorder %s28, 1
      %p177 = por %p175, %p176
      %p179 = scmp.ne.s32.totalorder %s164, %s178
      %p180 = scmp.eq.s32.totalorder %s28, 0
      %p181 = por %p179, %p180
      %s183 = sadd.s32 %s182, 1
      %p186 = scmp.eq.s32.totalorder %s22, 1
      %p187 = scmp.ne.s32.totalorder %s182, %s184
      %p188 = scmp.eq.s32.totalorder %s22, 0
      %p189 = por %p187, %p188
      %p190 = scmp.ne.s32.totalorder %s182, %s184
      %p191 = scmp.eq.s32.totalorder %s27, 1
      %p192 = por %p190, %p191
      %p193 = scmp.ne.s32.totalorder %s184, %s185
      %p194 = scmp.eq.s32.totalorder %s27, 0
      %p195 = por %p193, %p194
      %p196 = scmp.ne.s32.totalorder %s184, %s185
      %p197 = scmp.eq.s32.totalorder %s28, 1
      %p198 = por %p196, %p197
      %p200 = scmp.ne.s32.totalorder %s185, %s199
      %p201 = scmp.eq.s32.totalorder %s28, 0
      %p202 = por %p200, %p201
      %s204 = sadd.s32 %s203, 1
      %p207 = scmp.eq.s32.totalorder %s22, 1
      %p208 = scmp.ne.s32.totalorder %s203, %s205
      %p209 = scmp.eq.s32.totalorder %s22, 0
      %p210 = por %p208, %p209
      %p211 = scmp.ne.s32.totalorder %s203, %s205
      %p212 = scmp.eq.s32.totalorder %s27, 1
      %p213 = por %p211, %p212
      %p214 = scmp.ne.s32.totalorder %s205, %s206
      %p215 = scmp.eq.s32.totalorder %s27, 0
      %p216 = por %p214, %p215
      %p217 = scmp.ne.s32.totalorder %s205, %s206
      %p218 = scmp.eq.s32.totalorder %s28, 1
      %p219 = por %p217, %p218
      %p221 = scmp.ne.s32.totalorder %s206, %s220
      %p222 = scmp.eq.s32.totalorder %s28, 0
      %p223 = por %p221, %p222
      %s225 = sadd.s32 %s224, 1
      %p228 = scmp.eq.s32.totalorder %s22, 1
      %p229 = scmp.ne.s32.totalorder %s224, %s226
      %p230 = scmp.eq.s32.totalorder %s22, 0
      %p231 = por %p229, %p230
      %p232 = scmp.ne.s32.totalorder %s224, %s226
      %p233 = scmp.eq.s32.totalorder %s27, 1
      %p234 = por %p232, %p233
      %p235 = scmp.ne.s32.totalorder %s226, %s227
      %p236 = scmp.eq.s32.totalorder %s27, 0
      %p237 = por %p235, %p236
      %p238 = scmp.ne.s32.totalorder %s226, %s227
      %p239 = scmp.eq.s32.totalorder %s28, 1
      %p240 = por %p238, %p239
      %p242 = scmp.ne.s32.totalorder %s227, %s241
      %p243 = scmp.eq.s32.totalorder %s28, 0
      %p244 = por %p242, %p243
      %s246 = sadd.s32 %s245, 1
      %p249 = scmp.eq.s32.totalorder %s22, 1
      %p250 = scmp.ne.s32.totalorder %s245, %s247
      %p251 = scmp.eq.s32.totalorder %s22, 0
      %p252 = por %p250, %p251
      %p253 = scmp.ne.s32.totalorder %s245, %s247
      %p254 = scmp.eq.s32.totalorder %s27, 1
      %p255 = por %p253, %p254
      %p256 = scmp.ne.s32.totalorder %s247, %s248
      %p257 = scmp.eq.s32.totalorder %s27, 0
      %p258 = por %p256, %p257
      %p259 = scmp.ne.s32.totalorder %s247, %s248
      %p260 = scmp.eq.s32.totalorder %s28, 1
      %p261 = por %p259, %p260
      %p263 = scmp.ne.s32.totalorder %s248, %s262
      %p264 = scmp.eq.s32.totalorder %s28, 0
      %p265 = por %p263, %p264
      %s266 = ssub.s32 %s22, %s29
      %p267 = scmp.eq.s32.totalorder %s266, 0
      %s269 = sadd.s32 %s268, 1
      %s270 = scalar_select %p267, %s268, %s269
      %p273 = pneg %p267
      %p274 = scmp.eq.s32.totalorder %s22, 1
      %p275 = por %p273, %p274
      %p276 = scmp.ne.s32.totalorder %s268, %s271
      %p277 = scmp.eq.s32.totalorder %s22, 0
      %p278 = por %p276, %p277
      %p279 = scmp.ne.s32.totalorder %s268, %s271
      %p280 = scmp.eq.s32.totalorder %s27, 1
      %p281 = por %p279, %p280
      %p282 = scmp.ne.s32.totalorder %s271, %s272
      %p283 = scmp.eq.s32.totalorder %s27, 0
      %p284 = por %p282, %p283
      %p285 = scmp.ne.s32.totalorder %s271, %s272
      %p286 = scmp.eq.s32.totalorder %s28, 1
      %p287 = por %p285, %p286
      %p289 = scmp.ne.s32.totalorder %s272, %s288
      %p290 = scmp.eq.s32.totalorder %s28, 0
      %p291 = por %p289, %p290
      %p292 = scmp.le.s32.totalorder 1, %s22
      %p293 = scmp.lt.s32.totalorder %s22, 3
      %p294 = pnand %p292, %p293
      %p295 = pneg %p294
      // Predicated region
      $region9: #{tpu_custom_call.1} parent=5 // pred_check
        _
      $region10: #{tpu_custom_call.1} parent=5 // pred_check_branch
        %297 = sbr.rel (%p294) target = $region12
      $region11: #{tpu_custom_call.1} parent=5 // pred_region
        %s298 = ssub.s32 %s22, 1
        // Predicated region
        $region13: #{tpu_custom_call.1} parent=11 // pred_check
          %p299 = pneg %p69
        $region14: #{tpu_custom_call.1} parent=11 // pred_check_branch
          %301 = sbr.rel (%p299) target = $region16
        $region15: #{tpu_custom_call.1} parent=11 // pred_region
          %s303 = ssub.s32 16, 16
          %304 = vsyncadd [#allocation3], %s303
          %s306 = sshll.u32 [#allocation2], 4
          %s307 = int_to_ptr.vmem [resolvable:$true] %s306
          %309 = dma.hbm_to_vmem [thread:$0]  %s1, 16, %s307, [#allocation3]
        $region16: #{tpu_custom_call.1} parent=11 // pred_fallthru
          _
        // Predicated region
        $region17: #{tpu_custom_call.1} parent=11 // pred_check
          %p310 = pneg %p90
        $region18: #{tpu_custom_call.1} parent=11 // pred_check_branch
          %312 = sbr.rel (%p310) target = $region20
        $region19: #{tpu_custom_call.1} parent=11 // pred_region
          _
        $region20: #{tpu_custom_call.1} parent=11 // pred_fallthru
          _
        // Predicated region
        $region21: #{tpu_custom_call.1} parent=11 // pred_check
          %p313 = pneg %p111
        $region22: #{tpu_custom_call.1} parent=11 // pred_check_branch
          %315 = sbr.rel (%p313) target = $region24
        $region23: #{tpu_custom_call.1} parent=11 // pred_region
          %s317 = ssub.s32 128, 128
          %318 = vsyncadd [#allocation6], %s317
          %s319 = sshll.u32 [#allocation5], 4
          %s320 = int_to_ptr.vmem [resolvable:$true] %s319
          %325 = dma.hbm_to_vmem [thread:$0]  %s3, 128, %s320, [#allocation6], 64, 64, 4
        $region24: #{tpu_custom_call.1} parent=11 // pred_fallthru
          _
        // Predicated region
        $region25: #{tpu_custom_call.1} parent=11 // pred_check
          %p326 = pneg %p132
        $region26: #{tpu_custom_call.1} parent=11 // pred_check_branch
          %328 = sbr.rel (%p326) target = $region28
        $region27: #{tpu_custom_call.1} parent=11 // pred_region
          _
        $region28: #{tpu_custom_call.1} parent=11 // pred_fallthru
          _
        // Predicated region
        $region29: #{tpu_custom_call.1} parent=11 // pred_check
          %p329 = pneg %p153
        $region30: #{tpu_custom_call.1} parent=11 // pred_check_branch
          %331 = sbr.rel (%p329) target = $region32
        $region31: #{tpu_custom_call.1} parent=11 // pred_region
          _
        $region32: #{tpu_custom_call.1} parent=11 // pred_fallthru
          _
        // Predicated region
        $region33: #{tpu_custom_call.1} parent=11 // pred_check
          %p332 = pneg %p174
        $region34: #{tpu_custom_call.1} parent=11 // pred_check_branch
          %334 = sbr.rel (%p332) target = $region36
        $region35: #{tpu_custom_call.1} parent=11 // pred_region
          _
        $region36: #{tpu_custom_call.1} parent=11 // pred_fallthru
          _
        // Predicated region
        $region37: #{tpu_custom_call.1} parent=11 // pred_check
          %p335 = pneg %p195
        $region38: #{tpu_custom_call.1} parent=11 // pred_check_branch
          %337 = sbr.rel (%p335) target = $region40
        $region39: #{tpu_custom_call.1} parent=11 // pred_region
          _
        $region40: #{tpu_custom_call.1} parent=11 // pred_fallthru
          _
        // Predicated region
        $region41: #{tpu_custom_call.1} parent=11 // pred_check
          %p338 = pneg %p216
        $region42: #{tpu_custom_call.1} parent=11 // pred_check_branch
          %340 = sbr.rel (%p338) target = $region44
        $region43: #{tpu_custom_call.1} parent=11 // pred_region
          %s342 = ssub.s32 128, 128
          %343 = vsyncadd [#allocation6], %s342
          %s344 = sshll.u32 [#allocation7], 4
          %s345 = int_to_ptr.vmem [resolvable:$true] %s344
          %350 = dma.hbm_to_vmem [thread:$0]  %s8, 128, %s345, [#allocation6], 64, 64, 4
        $region44: #{tpu_custom_call.1} parent=11 // pred_fallthru
          _
        // Predicated region
        $region45: #{tpu_custom_call.1} parent=11 // pred_check
          %p351 = pneg %p237
        $region46: #{tpu_custom_call.1} parent=11 // pred_check_branch
          %353 = sbr.rel (%p351) target = $region48
        $region47: #{tpu_custom_call.1} parent=11 // pred_region
          _
        $region48: #{tpu_custom_call.1} parent=11 // pred_fallthru
          _
        // Predicated region
        $region49: #{tpu_custom_call.1} parent=11 // pred_check
          %p354 = pneg %p258
        $region50: #{tpu_custom_call.1} parent=11 // pred_check_branch
          %356 = sbr.rel (%p354) target = $region52
        $region51: #{tpu_custom_call.1} parent=11 // pred_region
          _
        $region52: #{tpu_custom_call.1} parent=11 // pred_fallthru
          _
      $region12: #{tpu_custom_call.1} parent=5 // pred_fallthru
        _
      %p357 = scmp.lt.s32.totalorder %s22, 2
      // Predicated region
      $region53: #{tpu_custom_call.1} parent=5 // pred_check
        %p358 = pneg %p357
      $region54: #{tpu_custom_call.1} parent=5 // pred_check_branch
        %360 = sbr.rel (%p358) target = $region56
      $region55: #{tpu_custom_call.1} parent=5 // pred_region
        // Predicated region
        $region57: #{tpu_custom_call.1} parent=55 // pred_check
          %p361 = pneg %p42
        $region58: #{tpu_custom_call.1} parent=55 // pred_check_branch
          %363 = sbr.rel (%p361) target = $region60
        $region59: #{tpu_custom_call.1} parent=55 // pred_region
          %p364 = scmp.lt.s32.totalorder %s22, 1
          %s365 = scalar_select %p364, %s22, 1
          %s366 = smul.addr %s365, 2
          %s367 = smul.addr %s366, 4
          %s368 = scalar_lea.vmem %s0, %s367
        $region60: #{tpu_custom_call.1} parent=55 // pred_fallthru
          _
      $region56: #{tpu_custom_call.1} parent=5 // pred_fallthru
        _
      %p369 = scmp.le.s32.totalorder 1, %s22
      %p370 = scmp.lt.s32.totalorder %s22, 3
      %p371 = pnand %p369, %p370
      %p372 = pneg %p371
      // Predicated region
      $region61: #{tpu_custom_call.1} parent=5 // pred_check
        _
      $region62: #{tpu_custom_call.1} parent=5 // pred_check_branch
        %374 = sbr.rel (%p371) target = $region64
      $region63: #{tpu_custom_call.1} parent=5 // pred_region
        %s375 = ssub.s32 %s22, 1
        // Predicated region
        $region65: #{tpu_custom_call.1} parent=63 // pred_check
          %p376 = pneg %p69
        $region66: #{tpu_custom_call.1} parent=63 // pred_check_branch
          %378 = sbr.rel (%p376) target = $region68
        $region67: #{tpu_custom_call.1} parent=63 // pred_region
          %379 = dma.done [#allocation3], 16
        $region68: #{tpu_custom_call.1} parent=63 // pred_fallthru
          _
        // Predicated region
        $region69: #{tpu_custom_call.1} parent=63 // pred_check
          %p380 = pneg %p111
        $region70: #{tpu_custom_call.1} parent=63 // pred_check_branch
          %382 = sbr.rel (%p380) target = $region72
        $region71: #{tpu_custom_call.1} parent=63 // pred_region
          %383 = dma.done [#allocation6], 128
        $region72: #{tpu_custom_call.1} parent=63 // pred_fallthru
          _
        // Predicated region
        $region73: #{tpu_custom_call.1} parent=63 // pred_check
          %p384 = pneg %p216
        $region74: #{tpu_custom_call.1} parent=63 // pred_check_branch
          %386 = sbr.rel (%p384) target = $region76
        $region75: #{tpu_custom_call.1} parent=63 // pred_region
          %387 = dma.done [#allocation6], 128
        $region76: #{tpu_custom_call.1} parent=63 // pred_fallthru
          _
        %p388 = scmp.lt.s32.totalorder %s27, 1
        %s389 = scalar_select %p388, %s27, 1
        %s390 = smul.addr %s389, 2
        %s391 = smul.addr %s390, 4
        %s392 = scalar_lea.vmem %s0, %s391
        %p393 = pneg %p48
        %p394 = pneg %p45
        %p395 = pneg %p69
        %p396 = pneg %p66
        %p397 = pneg %p90
        %p398 = pneg %p87
        %p399 = pneg %p111
        %p400 = pneg %p108
        %p401 = pneg %p132
        %p402 = pneg %p129
        %p403 = pneg %p153
        %p404 = pneg %p150
        %p405 = pneg %p174
        %p406 = pneg %p171
        %p407 = pneg %p195
        %p408 = pneg %p192
        %p409 = pneg %p216
        %p410 = pneg %p213
        %p411 = pneg %p237
        %p412 = pneg %p234
        %p413 = pneg %p258
        %p414 = pneg %p255
        %p415 = pneg %p284
        %p416 = pneg %p281
        %s417 = sand.u32 %s271, 1
        %s418 = scalar_lea.sflag [#allocation4], %s417
        %s419 = sand.u32 %s271, 1
        %s420 = smul.addr %s419, 8
        %s421 = scalar_lea.vmem [#allocation8], %s420
        %p422 = scmp.lt.s32.totalorder %s27, 1
        %s423 = scalar_select %p422, %s27, 1
        %s424 = smul.addr %s423, 2
        %s425 = smul.addr %s424, 4
        %s426 = scalar_lea.vmem %s0, %s425
        %v428 = vld [vmem:[%s426] sm:$0xff]
        %v430 = vcombine.high %v428, %v428
        %v432 = vpack.c.bf16 %v428, %v428
        %v433 = vpack.c.bf16 %v430, %v430
        %v434 = vld [vmem:[#allocation2] sm:$0x1]
        %v435 = vld [vmem:[%s2] sm:$0x3]
        %437 = vset.pattern.permute.xlu0 0
        %438 = vperm.xlu0 %437, %v435
        %v439 = vpop.permute.xlu0 %438
        %vm441 = vcmask 31744
        %v443 = vsel %vm441, %v434, 0
        %vm445 = vcmask 1041408
        %v447 = vsel %vm445, %v432, 0
        %v450 = vsel %vm445, %v433, 0
        %452 = vmatprep.subr.bf16.mxu0 0
        %453 = vmatpush1.bf16.msra.mxu0 0
        %454 = vmatprep.subr.bf16.mxu0 0
        %455 = vmatpush1.bf16.msra.mxu0 0
        %456 = vmatprep.subr.bf16.mxu0 0
        %457 = vmatpush1.bf16.msra.mxu0 0
        %458 = vmatprep.subr.bf16.mxu0 0
        %459 = vmatpush1.bf16.msra.mxu0 0
        %460 = vmatprep.subr.bf16.mxu0 0
        %461 = vmatpush1.bf16.msra.mxu0 0
        %462 = vmatprep.subr.bf16.mxu0 0
        %463 = vmatpush1.bf16.msra.mxu0 0
        %464 = vmatprep.subr.bf16.mxu0 0
        %465 = vmatpush1.bf16.msra.mxu0 0
        %466 = vmatprep.subr.bf16.mxu0 %v450
        %467 = vmatpush1.bf16.msra.mxu0 %v447
        %468 = vmatprep.subr.bf16.mxu0 0
        %469 = vmatpush2.bf16.msra.mxu0 0
        %470 = vmatprep.subr.bf16.mxu0 0
        %471 = vmatpush2.bf16.msra.mxu0 0
        %472 = vmatprep.subr.bf16.mxu0 0
        %473 = vmatpush2.bf16.msra.mxu0 0
        %474 = vmatprep.subr.bf16.mxu0 0
        %475 = vmatpush2.bf16.msra.mxu0 0
        %476 = vmatprep.subr.bf16.mxu0 0
        %477 = vmatpush2.bf16.msra.mxu0 0
        %478 = vmatprep.subr.bf16.mxu0 0
        %479 = vmatpush2.bf16.msra.mxu0 0
        %480 = vmatprep.subr.bf16.mxu0 0
        %481 = vmatpush2.bf16.msra.mxu0 0
        %482 = vmatprep.subr.bf16.mxu0 0
        %483 = vmatpush2.bf16.msra.mxu0 0
        %484 = vmatprep.mubr.bf16.mxu0 0
        %485 = vmatmul.mubr.bf16.gmra.mxu0 %v443
        %v486 = vpop.f32.mrf.mxu0
        %v487 = vadd.f32 %v439, %v486
        %v488 = vpop.f32.mrf.mxu0
        %v489 = vadd.f32 %v439, %v488
        %v490 = vpop.f32.mrf.mxu0
        %v491 = vpop.f32.mrf.mxu0
        %492 = vdwg.mxu0
        %v493 = vmax.f32 %v487, 0.0
        %v494 = vmax.f32 %v489, 0.0
        %v495 = vpack.c.bf16 %v493, %v493
        %v496 = vpack.c.bf16 %v494, %v494
        %498 = vrot.lane.b32.xlu0 %v495, 112
        %v499 = vpop.permute.xlu0 %498
        %501 = vrot.lane.b32.xlu0 %v495, 96
        %v502 = vpop.permute.xlu0 %501
        %504 = vrot.lane.b32.xlu0 %v495, 80
        %v505 = vpop.permute.xlu0 %504
        %507 = vrot.lane.b32.xlu0 %v495, 64
        %v508 = vpop.permute.xlu0 %507
        %510 = vrot.lane.b32.xlu0 %v495, 48
        %v511 = vpop.permute.xlu0 %510
        %513 = vrot.lane.b32.xlu0 %v495, 32
        %v514 = vpop.permute.xlu0 %513
        %516 = vrot.lane.b32.xlu0 %v495, 16
        %v517 = vpop.permute.xlu0 %516
        %520 = vrot.lane.b32.xlu0 %v496, 112
        %v521 = vpop.permute.xlu0 %520
        %523 = vrot.lane.b32.xlu0 %v496, 96
        %v524 = vpop.permute.xlu0 %523
        %526 = vrot.lane.b32.xlu0 %v496, 80
        %v527 = vpop.permute.xlu0 %526
        %529 = vrot.lane.b32.xlu0 %v496, 64
        %v530 = vpop.permute.xlu0 %529
        %532 = vrot.lane.b32.xlu0 %v496, 48
        %v533 = vpop.permute.xlu0 %532
        %535 = vrot.lane.b32.xlu0 %v496, 32
        %v536 = vpop.permute.xlu0 %535
        %538 = vrot.lane.b32.xlu0 %v496, 16
        %v539 = vpop.permute.xlu0 %538
        %v541 = vcombine.low %v495, %v508
        %v543 = vunpack.c.l.s4 1983009808
        %v544 = vunpack.c.0.s8 %v543
        %v545 = vlaneseq
        %v546 = vshrl.u32 %v545, 7
        %v547 = vsub.s32 %v544, %v546
        %v548 = vrot.slane %v541, %v547
        %v549 = vcombine.low %v502, %v514
        %v551 = vunpack.c.l.s4 1983009808
        %v552 = vunpack.c.0.s8 %v551
        %v553 = vlaneseq
        %v554 = vshrl.u32 %v553, 7
        %v555 = vsub.s32 %v552, %v554
        %v556 = vrot.slane %v549, %v555
        %v557 = vcombine.low %v496, %v530
        %v559 = vunpack.c.l.s4 1983009808
        %v560 = vunpack.c.0.s8 %v559
        %v561 = vlaneseq
        %v562 = vshrl.u32 %v561, 7
        %v563 = vsub.s32 %v560, %v562
        %v564 = vrot.slane %v557, %v563
        %v565 = vcombine.low %v524, %v536
        %v567 = vunpack.c.l.s4 1983009808
        %v568 = vunpack.c.0.s8 %v567
        %v569 = vlaneseq
        %v570 = vshrl.u32 %v569, 7
        %v571 = vsub.s32 %v568, %v570
        %v572 = vrot.slane %v565, %v571
        %v573 = vcombine.low %v548, %v556
        %v575 = vunpack.c.l.s4 1934713408
        %v576 = vunpack.c.0.s8 %v575
        %v577 = vlaneseq
        %v578 = vshrl.u32 %v577, 7
        %v579 = vsub.s32 %v576, %v578
        %v580 = vrot.slane %v573, %v579
        %v581 = vcombine.low %v564, %v572
        %v583 = vunpack.c.l.s4 1934713408
        %v584 = vunpack.c.0.s8 %v583
        %v585 = vlaneseq
        %v586 = vshrl.u32 %v585, 7
        %v587 = vsub.s32 %v584, %v586
        %v588 = vrot.slane %v581, %v587
        %v589 = vcombine.low %v580, %v588
        %v590 = vcombine.low %v499, %v511
        %v592 = vunpack.c.l.s4 1983009808
        %v593 = vunpack.c.0.s8 %v592
        %v594 = vlaneseq
        %v595 = vshrl.u32 %v594, 7
        %v596 = vsub.s32 %v593, %v595
        %v597 = vrot.slane %v590, %v596
        %v598 = vcombine.low %v505, %v517
        %v600 = vunpack.c.l.s4 1983009808
        %v601 = vunpack.c.0.s8 %v600
        %v602 = vlaneseq
        %v603 = vshrl.u32 %v602, 7
        %v604 = vsub.s32 %v601, %v603
        %v605 = vrot.slane %v598, %v604
        %v606 = vcombine.low %v521, %v533
        %v608 = vunpack.c.l.s4 1983009808
        %v609 = vunpack.c.0.s8 %v608
        %v610 = vlaneseq
        %v611 = vshrl.u32 %v610, 7
        %v612 = vsub.s32 %v609, %v611
        %v613 = vrot.slane %v606, %v612
        %v614 = vcombine.low %v527, %v539
        %v616 = vunpack.c.l.s4 1983009808
        %v617 = vunpack.c.0.s8 %v616
        %v618 = vlaneseq
        %v619 = vshrl.u32 %v618, 7
        %v620 = vsub.s32 %v617, %v619
        %v621 = vrot.slane %v614, %v620
        %v622 = vcombine.low %v597, %v605
        %v624 = vunpack.c.l.s4 1934713408
        %v625 = vunpack.c.0.s8 %v624
        %v626 = vlaneseq
        %v627 = vshrl.u32 %v626, 7
        %v628 = vsub.s32 %v625, %v627
        %v629 = vrot.slane %v622, %v628
        %v630 = vcombine.low %v613, %v621
        %v632 = vunpack.c.l.s4 1934713408
        %v633 = vunpack.c.0.s8 %v632
        %v634 = vlaneseq
        %v635 = vshrl.u32 %v634, 7
        %v636 = vsub.s32 %v633, %v635
        %v637 = vrot.slane %v630, %v636
        %v638 = vcombine.low %v629, %v637
        %v641 = vpack.i.b16 %v638, %v589
        %v642 = vshrl.u32 %v589, 16
        %v643 = vshrl.u32 %v638, 16
        %v644 = vpack.i.b16 %v643, %v642
        %v647 = vpack.i.b16 %v644, %v641
        %v649 = vshrl.u32 %v641, 16
        %v650 = vshrl.u32 %v644, 16
        %v651 = vpack.i.b16 %v650, %v649
        %v654 = vpack.i.b16 0, 0
        %v656 = vshrl.u32 0, 16
        %v657 = vpack.i.b16 %v656, %v656
        %v659 = vcombine.high %v647, %v654
        %v661 = vunpack.c.l.s4 1983009808
        %v662 = vunpack.c.0.s8 %v661
        %v663 = vlaneseq
        %v664 = vshrl.u32 %v663, 7
        %v665 = vsub.s32 %v662, %v664
        %v666 = vrot.slane %v647, %v665
        %v668 = vunpack.c.l.s4 1983009808
        %v669 = vunpack.c.0.s8 %v668
        %v670 = vlaneseq
        %v671 = vshrl.u32 %v670, 7
        %v672 = vsub.s32 %v669, %v671
        %v673 = vrot.slane %v659, %v672
        %v674 = vcombine.high %v666, 0
        %v676 = vunpack.c.l.s4 1934713408
        %v677 = vunpack.c.0.s8 %v676
        %v678 = vlaneseq
        %v679 = vshrl.u32 %v678, 7
        %v680 = vsub.s32 %v677, %v679
        %v681 = vrot.slane %v666, %v680
        %v683 = vunpack.c.l.s4 1934713408
        %v684 = vunpack.c.0.s8 %v683
        %v685 = vlaneseq
        %v686 = vshrl.u32 %v685, 7
        %v687 = vsub.s32 %v684, %v686
        %v688 = vrot.slane %v674, %v687
        %v689 = vcombine.high %v673, 0
        %v691 = vunpack.c.l.s4 1934713408
        %v692 = vunpack.c.0.s8 %v691
        %v693 = vlaneseq
        %v694 = vshrl.u32 %v693, 7
        %v695 = vsub.s32 %v692, %v694
        %v696 = vrot.slane %v673, %v695
        %v698 = vunpack.c.l.s4 1934713408
        %v699 = vunpack.c.0.s8 %v698
        %v700 = vlaneseq
        %v701 = vshrl.u32 %v700, 7
        %v702 = vsub.s32 %v699, %v701
        %v703 = vrot.slane %v689, %v702
        %v704 = vcombine.high %v681, 0
        %v705 = vcombine.high %v688, 0
        %v706 = vcombine.high %v696, 0
        %v707 = vcombine.high %v703, 0
        %v708 = vcombine.high %v651, %v657
        %v710 = vunpack.c.l.s4 1983009808
        %v711 = vunpack.c.0.s8 %v710
        %v712 = vlaneseq
        %v713 = vshrl.u32 %v712, 7
        %v714 = vsub.s32 %v711, %v713
        %v715 = vrot.slane %v651, %v714
        %v717 = vunpack.c.l.s4 1983009808
        %v718 = vunpack.c.0.s8 %v717
        %v719 = vlaneseq
        %v720 = vshrl.u32 %v719, 7
        %v721 = vsub.s32 %v718, %v720
        %v722 = vrot.slane %v708, %v721
        %v723 = vcombine.high %v715, 0
        %v725 = vunpack.c.l.s4 1934713408
        %v726 = vunpack.c.0.s8 %v725
        %v727 = vlaneseq
        %v728 = vshrl.u32 %v727, 7
        %v729 = vsub.s32 %v726, %v728
        %v730 = vrot.slane %v715, %v729
        %v732 = vunpack.c.l.s4 1934713408
        %v733 = vunpack.c.0.s8 %v732
        %v734 = vlaneseq
        %v735 = vshrl.u32 %v734, 7
        %v736 = vsub.s32 %v733, %v735
        %v737 = vrot.slane %v723, %v736
        %v738 = vcombine.high %v722, 0
        %v740 = vunpack.c.l.s4 1934713408
        %v741 = vunpack.c.0.s8 %v740
        %v742 = vlaneseq
        %v743 = vshrl.u32 %v742, 7
        %v744 = vsub.s32 %v741, %v743
        %v745 = vrot.slane %v722, %v744
        %v747 = vunpack.c.l.s4 1934713408
        %v748 = vunpack.c.0.s8 %v747
        %v749 = vlaneseq
        %v750 = vshrl.u32 %v749, 7
        %v751 = vsub.s32 %v748, %v750
        %v752 = vrot.slane %v738, %v751
        %v753 = vcombine.high %v730, 0
        %v754 = vcombine.high %v737, 0
        %v755 = vcombine.high %v745, 0
        %v756 = vcombine.high %v752, 0
        %v757 = vcombine.low %v681, %v688
        %v759 = vunpack.c.l.s4 1983009808
        %v760 = vunpack.c.0.s8 %v759
        %v761 = vlaneseq
        %v762 = vshrl.u32 %v761, 7
        %v763 = vsub.s32 %v760, %v762
        %v764 = vrot.slane %v757, %v763
        %v765 = vcombine.low %v704, %v705
        %v767 = vunpack.c.l.s4 1983009808
        %v768 = vunpack.c.0.s8 %v767
        %v769 = vlaneseq
        %v770 = vshrl.u32 %v769, 7
        %v771 = vsub.s32 %v768, %v770
        %v772 = vrot.slane %v765, %v771
        %v773 = vcombine.low %v696, %v703
        %v775 = vunpack.c.l.s4 1983009808
        %v776 = vunpack.c.0.s8 %v775
        %v777 = vlaneseq
        %v778 = vshrl.u32 %v777, 7
        %v779 = vsub.s32 %v776, %v778
        %v780 = vrot.slane %v773, %v779
        %v781 = vcombine.low %v706, %v707
        %v783 = vunpack.c.l.s4 1983009808
        %v784 = vunpack.c.0.s8 %v783
        %v785 = vlaneseq
        %v786 = vshrl.u32 %v785, 7
        %v787 = vsub.s32 %v784, %v786
        %v788 = vrot.slane %v781, %v787
        %v789 = vcombine.low %v764, %v772
        %v791 = vunpack.c.l.s4 1934713408
        %v792 = vunpack.c.0.s8 %v791
        %v793 = vlaneseq
        %v794 = vshrl.u32 %v793, 7
        %v795 = vsub.s32 %v792, %v794
        %v796 = vrot.slane %v789, %v795
        %v797 = vcombine.low %v780, %v788
        %v799 = vunpack.c.l.s4 1934713408
        %v800 = vunpack.c.0.s8 %v799
        %v801 = vlaneseq
        %v802 = vshrl.u32 %v801, 7
        %v803 = vsub.s32 %v800, %v802
        %v804 = vrot.slane %v797, %v803
        %v805 = vcombine.low %v796, %v804
        %v806 = vcombine.low %v730, %v737
        %v808 = vunpack.c.l.s4 1983009808
        %v809 = vunpack.c.0.s8 %v808
        %v810 = vlaneseq
        %v811 = vshrl.u32 %v810, 7
        %v812 = vsub.s32 %v809, %v811
        %v813 = vrot.slane %v806, %v812
        %v814 = vcombine.low %v753, %v754
        %v816 = vunpack.c.l.s4 1983009808
        %v817 = vunpack.c.0.s8 %v816
        %v818 = vlaneseq
        %v819 = vshrl.u32 %v818, 7
        %v820 = vsub.s32 %v817, %v819
        %v821 = vrot.slane %v814, %v820
        %v822 = vcombine.low %v745, %v752
        %v824 = vunpack.c.l.s4 1983009808
        %v825 = vunpack.c.0.s8 %v824
        %v826 = vlaneseq
        %v827 = vshrl.u32 %v826, 7
        %v828 = vsub.s32 %v825, %v827
        %v829 = vrot.slane %v822, %v828
        %v830 = vcombine.low %v755, %v756
        %v832 = vunpack.c.l.s4 1983009808
        %v833 = vunpack.c.0.s8 %v832
        %v834 = vlaneseq
        %v835 = vshrl.u32 %v834, 7
        %v836 = vsub.s32 %v833, %v835
        %v837 = vrot.slane %v830, %v836
        %v838 = vcombine.low %v813, %v821
        %v840 = vunpack.c.l.s4 1934713408
        %v841 = vunpack.c.0.s8 %v840
        %v842 = vlaneseq
        %v843 = vshrl.u32 %v842, 7
        %v844 = vsub.s32 %v841, %v843
        %v845 = vrot.slane %v838, %v844
        %v846 = vcombine.low %v829, %v837
        %v848 = vunpack.c.l.s4 1934713408
        %v849 = vunpack.c.0.s8 %v848
        %v850 = vlaneseq
        %v851 = vshrl.u32 %v850, 7
        %v852 = vsub.s32 %v849, %v851
        %v853 = vrot.slane %v846, %v852
        %v854 = vcombine.low %v845, %v853
        %v857 = vpack.i.b16 %v854, %v805
        %v858 = vshrl.u32 %v805, 16
        %v859 = vshrl.u32 %v854, 16
        %v860 = vpack.i.b16 %v859, %v858
        %861 = vrot.lane.b32.xlu0 %v860, 16
        %v862 = vpop.permute.xlu0 %861
        %vm863 = vcmask 130048
        %v866 = vsel %vm863, %v857, %v862
        %v868 = vld [vmem:[#allocation5] sm:$0xf]
        %v869 = vld [vmem:[#allocation5 + $0x4] sm:$0x1]
        %v872 = vunpack.c.l.b16 %v868
        %v873 = vunpack.c.l.b16 %v869
        %v874 = vpack.c.b16 %v873, %v872
        %v876 = vsel %vm863, %v874, 0
        %878 = vmatprep.subr.bf16.mxu0 0
        %879 = vmatpush1.bf16.msra.mxu0 0
        %880 = vmatprep.subr.bf16.mxu0 0
        %881 = vmatpush1.bf16.msra.mxu0 0
        %882 = vmatprep.subr.bf16.mxu0 0
        %883 = vmatpush1.bf16.msra.mxu0 0
        %884 = vmatprep.subr.bf16.mxu0 0
        %885 = vmatpush1.bf16.msra.mxu0 0
        %886 = vmatprep.subr.bf16.mxu0 0
        %887 = vmatpush1.bf16.msra.mxu0 0
        %888 = vmatprep.subr.bf16.mxu0 0
        %889 = vmatpush1.bf16.msra.mxu0 0
        %890 = vmatprep.subr.bf16.mxu0 0
        %891 = vmatpush1.bf16.msra.mxu0 0
        %892 = vmatprep.subr.bf16.mxu0 0
        %893 = vmatpush1.bf16.msra.mxu0 %v866
        %894 = vmatprep.subr.bf16.mxu0 0
        %895 = vmatpush2.bf16.msra.mxu0 0
        %896 = vmatprep.subr.bf16.mxu0 0
        %897 = vmatpush2.bf16.msra.mxu0 0
        %898 = vmatprep.subr.bf16.mxu0 0
        %899 = vmatpush2.bf16.msra.mxu0 0
        %900 = vmatprep.subr.bf16.mxu0 0
        %901 = vmatpush2.bf16.msra.mxu0 0
        %902 = vmatprep.subr.bf16.mxu0 0
        %903 = vmatpush2.bf16.msra.mxu0 0
        %904 = vmatprep.subr.bf16.mxu0 0
        %905 = vmatpush2.bf16.msra.mxu0 0
        %906 = vmatprep.subr.bf16.mxu0 0
        %907 = vmatpush2.bf16.msra.mxu0 0
        %908 = vmatprep.subr.bf16.mxu0 0
        %909 = vmatpush2.bf16.msra.mxu0 0
        %910 = vmatprep.mubr.bf16.mxu0 0
        %911 = vmatmul.mubr.bf16.gmra.mxu0 %v876
        %v912 = vpop.f32.mrf.mxu0
        %v913 = vadd.f32 0.0, %v912
        %v914 = vpop.f32.mrf.mxu0
        %v915 = vpop.f32.mrf.mxu0
        %v916 = vadd.f32 0.0, %v915
        %v917 = vpop.f32.mrf.mxu0
        %918 = vdwg.mxu0
        %v919 = vld [vmem:[%s4] sm:$0xf]
        %v920 = vld [vmem:[%s4 + $0x4] sm:$0x1]
        %v923 = vunpack.c.l.b16 %v919
        %v924 = vunpack.c.l.b16 %v920
        %v925 = vpack.c.b16 %v924, %v923
        %v927 = vsel %vm863, %v925, 0
        %929 = vmatprep.subr.bf16.mxu0 0
        %930 = vmatpush1.bf16.msra.mxu0 0
        %931 = vmatprep.subr.bf16.mxu0 0
        %932 = vmatpush1.bf16.msra.mxu0 0
        %933 = vmatprep.subr.bf16.mxu0 0
        %934 = vmatpush1.bf16.msra.mxu0 0
        %935 = vmatprep.subr.bf16.mxu0 0
        %936 = vmatpush1.bf16.msra.mxu0 0
        %937 = vmatprep.subr.bf16.mxu0 0
        %938 = vmatpush1.bf16.msra.mxu0 0
        %939 = vmatprep.subr.bf16.mxu0 0
        %940 = vmatpush1.bf16.msra.mxu0 0
        %941 = vmatprep.subr.bf16.mxu0 0
        %942 = vmatpush1.bf16.msra.mxu0 0
        %943 = vmatprep.subr.bf16.mxu0 0
        %944 = vmatpush1.bf16.msra.mxu0 %v866
        %945 = vmatprep.subr.bf16.mxu0 0
        %946 = vmatpush2.bf16.msra.mxu0 0
        %947 = vmatprep.subr.bf16.mxu0 0
        %948 = vmatpush2.bf16.msra.mxu0 0
        %949 = vmatprep.subr.bf16.mxu0 0
        %950 = vmatpush2.bf16.msra.mxu0 0
        %951 = vmatprep.subr.bf16.mxu0 0
        %952 = vmatpush2.bf16.msra.mxu0 0
        %953 = vmatprep.subr.bf16.mxu0 0
        %954 = vmatpush2.bf16.msra.mxu0 0
        %955 = vmatprep.subr.bf16.mxu0 0
        %956 = vmatpush2.bf16.msra.mxu0 0
        %957 = vmatprep.subr.bf16.mxu0 0
        %958 = vmatpush2.bf16.msra.mxu0 0
        %959 = vmatprep.subr.bf16.mxu0 0
        %960 = vmatpush2.bf16.msra.mxu0 0
        %961 = vmatprep.mubr.bf16.mxu0 0
        %962 = vmatmul.mubr.bf16.gmra.mxu0 %v927
        %v963 = vpop.f32.mrf.mxu0
        %v964 = vadd.f32 0.0, %v963
        %v965 = vpop.f32.mrf.mxu0
        %v966 = vpop.f32.mrf.mxu0
        %v967 = vadd.f32 0.0, %v966
        %v968 = vpop.f32.mrf.mxu0
        %969 = vdwg.mxu0
        %v970 = vpack.c.bf16 %v916, %v913
        %972 = vrot.lane.b32.xlu0 %v970, 112
        %v973 = vpop.permute.xlu0 %972
        %v976 = vunpack.c.l.s4 1983009808
        %v977 = vunpack.c.0.s8 %v976
        %v978 = vlaneseq
        %v979 = vshrl.u32 %v978, 7
        %v980 = vsub.s32 %v977, %v979
        %v981 = vrot.slane %v970, %v980
        %v982 = vcombine.high %v981, 0
        %v984 = vunpack.c.l.s4 1934713408
        %v985 = vunpack.c.0.s8 %v984
        %v986 = vlaneseq
        %v987 = vshrl.u32 %v986, 7
        %v988 = vsub.s32 %v985, %v987
        %v989 = vrot.slane %v981, %v988
        %v991 = vunpack.c.l.s4 1934713408
        %v992 = vunpack.c.0.s8 %v991
        %v993 = vlaneseq
        %v994 = vshrl.u32 %v993, 7
        %v995 = vsub.s32 %v992, %v994
        %v996 = vrot.slane %v982, %v995
        %v997 = vcombine.high %v989, 0
        %v998 = vcombine.high %v996, 0
        %v999 = vcombine.high %v970, 0
        %v1001 = vunpack.c.l.s4 1983009808
        %v1002 = vunpack.c.0.s8 %v1001
        %v1003 = vlaneseq
        %v1004 = vshrl.u32 %v1003, 7
        %v1005 = vsub.s32 %v1002, %v1004
        %v1006 = vrot.slane %v973, %v1005
        %v1007 = vcombine.high %v1006, 0
        %v1009 = vunpack.c.l.s4 1934713408
        %v1010 = vunpack.c.0.s8 %v1009
        %v1011 = vlaneseq
        %v1012 = vshrl.u32 %v1011, 7
        %v1013 = vsub.s32 %v1010, %v1012
        %v1014 = vrot.slane %v1006, %v1013
        %v1016 = vunpack.c.l.s4 1934713408
        %v1017 = vunpack.c.0.s8 %v1016
        %v1018 = vlaneseq
        %v1019 = vshrl.u32 %v1018, 7
        %v1020 = vsub.s32 %v1017, %v1019
        %v1021 = vrot.slane %v1007, %v1020
        %v1022 = vcombine.high %v1014, 0
        %v1023 = vcombine.high %v1021, 0
        %v1024 = vcombine.high %v973, 0
        %v1027 = vpack.i.b16 %v1014, %v989
        %v1029 = vshrl.u32 %v989, 16
        %v1030 = vshrl.u32 %v1014, 16
        %v1031 = vpack.i.b16 %v1030, %v1029
        %v1035 = vpack.i.b16 %v1022, %v997
        %v1037 = vshrl.u32 %v997, 16
        %v1038 = vshrl.u32 %v1022, 16
        %v1039 = vpack.i.b16 %v1038, %v1037
        %v1043 = vpack.i.b16 %v1021, %v996
        %v1045 = vshrl.u32 %v996, 16
        %v1046 = vshrl.u32 %v1021, 16
        %v1047 = vpack.i.b16 %v1046, %v1045
        %v1051 = vpack.i.b16 %v1023, %v998
        %v1053 = vshrl.u32 %v998, 16
        %v1054 = vshrl.u32 %v1023, 16
        %v1055 = vpack.i.b16 %v1054, %v1053
        %v1059 = vpack.i.b16 %v1024, %v999
        %v1060 = vcombine.low %v1027, %v1043
        %v1062 = vunpack.c.l.s4 1983009808
        %v1063 = vunpack.c.0.s8 %v1062
        %v1064 = vlaneseq
        %v1065 = vshrl.u32 %v1064, 7
        %v1066 = vsub.s32 %v1063, %v1065
        %v1067 = vrot.slane %v1060, %v1066
        %v1068 = vcombine.low %v1035, %v1051
        %v1070 = vunpack.c.l.s4 1983009808
        %v1071 = vunpack.c.0.s8 %v1070
        %v1072 = vlaneseq
        %v1073 = vshrl.u32 %v1072, 7
        %v1074 = vsub.s32 %v1071, %v1073
        %v1075 = vrot.slane %v1068, %v1074
        %v1076 = vcombine.low %v1067, %v1075
        %v1078 = vunpack.c.l.s4 1934713408
        %v1079 = vunpack.c.0.s8 %v1078
        %v1080 = vlaneseq
        %v1081 = vshrl.u32 %v1080, 7
        %v1082 = vsub.s32 %v1079, %v1081
        %v1083 = vrot.slane %v1076, %v1082
        %v1085 = vcombine.low %v1083, %v1059
        %v1086 = vcombine.low %v1031, %v1047
        %v1088 = vunpack.c.l.s4 1983009808
        %v1089 = vunpack.c.0.s8 %v1088
        %v1090 = vlaneseq
        %v1091 = vshrl.u32 %v1090, 7
        %v1092 = vsub.s32 %v1089, %v1091
        %v1093 = vrot.slane %v1086, %v1092
        %v1094 = vcombine.low %v1039, %v1055
        %v1096 = vunpack.c.l.s4 1983009808
        %v1097 = vunpack.c.0.s8 %v1096
        %v1098 = vlaneseq
        %v1099 = vshrl.u32 %v1098, 7
        %v1100 = vsub.s32 %v1097, %v1099
        %v1101 = vrot.slane %v1094, %v1100
        %v1102 = vcombine.low %v1093, %v1101
        %v1104 = vunpack.c.l.s4 1934713408
        %v1105 = vunpack.c.0.s8 %v1104
        %v1106 = vlaneseq
        %v1107 = vshrl.u32 %v1106, 7
        %v1108 = vsub.s32 %v1105, %v1107
        %v1109 = vrot.slane %v1102, %v1108
        %v1112 = vpack.i.b16 %v1109, %v1085
        %v1114 = vshrl.u32 %v1085, 16
        %v1115 = vshrl.u32 %v1109, 16
        %v1116 = vpack.i.b16 %v1115, %v1114
        %v1119 = vunpack.c.l.s4 1983009808
        %v1120 = vunpack.c.0.s8 %v1119
        %v1121 = vlaneseq
        %v1122 = vshrl.u32 %v1121, 7
        %v1123 = vsub.s32 %v1120, %v1122
        %v1124 = vrot.slane %v1112, %v1123
        %v1125 = vcombine.high %v1124, 0
        %v1127 = vunpack.c.l.s4 1934713408
        %v1128 = vunpack.c.0.s8 %v1127
        %v1129 = vlaneseq
        %v1130 = vshrl.u32 %v1129, 7
        %v1131 = vsub.s32 %v1128, %v1130
        %v1132 = vrot.slane %v1124, %v1131
        %v1134 = vunpack.c.l.s4 1934713408
        %v1135 = vunpack.c.0.s8 %v1134
        %v1136 = vlaneseq
        %v1137 = vshrl.u32 %v1136, 7
        %v1138 = vsub.s32 %v1135, %v1137
        %v1139 = vrot.slane %v1125, %v1138
        %v1140 = vcombine.high %v1132, 0
        %v1141 = vcombine.high %v1139, 0
        %v1142 = vcombine.high %v1112, 0
        %v1144 = vunpack.c.l.s4 1983009808
        %v1145 = vunpack.c.0.s8 %v1144
        %v1146 = vlaneseq
        %v1147 = vshrl.u32 %v1146, 7
        %v1148 = vsub.s32 %v1145, %v1147
        %v1149 = vrot.slane %v1116, %v1148
        %v1150 = vcombine.high %v1149, 0
        %v1152 = vunpack.c.l.s4 1934713408
        %v1153 = vunpack.c.0.s8 %v1152
        %v1154 = vlaneseq
        %v1155 = vshrl.u32 %v1154, 7
        %v1156 = vsub.s32 %v1153, %v1155
        %v1157 = vrot.slane %v1149, %v1156
        %v1159 = vunpack.c.l.s4 1934713408
        %v1160 = vunpack.c.0.s8 %v1159
        %v1161 = vlaneseq
        %v1162 = vshrl.u32 %v1161, 7
        %v1163 = vsub.s32 %v1160, %v1162
        %v1164 = vrot.slane %v1150, %v1163
        %v1165 = vcombine.high %v1157, 0
        %v1166 = vcombine.high %v1164, 0
        %v1167 = vcombine.high %v1116, 0
        %v1170 = vpack.i.b16 %v1157, %v1132
        %v1171 = vshrl.u32 %v1132, 16
        %v1172 = vshrl.u32 %v1157, 16
        %v1173 = vpack.i.b16 %v1172, %v1171
        %v1176 = vpack.i.b16 %v1165, %v1140
        %v1177 = vshrl.u32 %v1140, 16
        %v1178 = vshrl.u32 %v1165, 16
        %v1179 = vpack.i.b16 %v1178, %v1177
        %v1182 = vpack.i.b16 %v1164, %v1139
        %v1183 = vshrl.u32 %v1139, 16
        %v1184 = vshrl.u32 %v1164, 16
        %v1185 = vpack.i.b16 %v1184, %v1183
        %v1188 = vpack.i.b16 %v1166, %v1141
        %v1189 = vshrl.u32 %v1141, 16
        %v1190 = vshrl.u32 %v1166, 16
        %v1191 = vpack.i.b16 %v1190, %v1189
        %v1194 = vpack.i.b16 %v1167, %v1142
        %1195 = vrot.lane.b32.xlu0 %v1173, 16
        %v1196 = vpop.permute.xlu0 %1195
        %1197 = vrot.lane.b32.xlu0 %v1176, 32
        %v1198 = vpop.permute.xlu0 %1197
        %1199 = vrot.lane.b32.xlu0 %v1179, 48
        %v1200 = vpop.permute.xlu0 %1199
        %1201 = vrot.lane.b32.xlu0 %v1182, 64
        %v1202 = vpop.permute.xlu0 %1201
        %1203 = vrot.lane.b32.xlu0 %v1185, 80
        %v1204 = vpop.permute.xlu0 %1203
        %1205 = vrot.lane.b32.xlu0 %v1188, 96
        %v1206 = vpop.permute.xlu0 %1205
        %1207 = vrot.lane.b32.xlu0 %v1191, 112
        %v1208 = vpop.permute.xlu0 %1207
        %v1211 = vsel %vm863, %v1170, %v1196
        %vm1212 = vcmask 261120
        %v1214 = vsel %vm1212, %v1211, %v1198
        %vm1215 = vcmask 392192
        %v1217 = vsel %vm1215, %v1214, %v1200
        %vm1218 = vcmask 523264
        %v1220 = vsel %vm1218, %v1217, %v1202
        %vm1221 = vcmask 654336
        %v1223 = vsel %vm1221, %v1220, %v1204
        %vm1224 = vcmask 785408
        %v1226 = vsel %vm1224, %v1223, %v1206
        %vm1227 = vcmask 916480
        %v1229 = vsel %vm1227, %v1226, %v1208
        %v1230 = vpack.c.bf16 %v967, %v964
        %1232 = vrot.lane.b32.xlu0 %v1230, 112
        %v1233 = vpop.permute.xlu0 %1232
        %v1236 = vunpack.c.l.s4 1983009808
        %v1237 = vunpack.c.0.s8 %v1236
        %v1238 = vlaneseq
        %v1239 = vshrl.u32 %v1238, 7
        %v1240 = vsub.s32 %v1237, %v1239
        %v1241 = vrot.slane %v1230, %v1240
        %v1242 = vcombine.high %v1241, 0
        %v1244 = vunpack.c.l.s4 1934713408
        %v1245 = vunpack.c.0.s8 %v1244
        %v1246 = vlaneseq
        %v1247 = vshrl.u32 %v1246, 7
        %v1248 = vsub.s32 %v1245, %v1247
        %v1249 = vrot.slane %v1241, %v1248
        %v1251 = vunpack.c.l.s4 1934713408
        %v1252 = vunpack.c.0.s8 %v1251
        %v1253 = vlaneseq
        %v1254 = vshrl.u32 %v1253, 7
        %v1255 = vsub.s32 %v1252, %v1254
        %v1256 = vrot.slane %v1242, %v1255
        %v1257 = vcombine.high %v1249, 0
        %v1258 = vcombine.high %v1256, 0
        %v1259 = vcombine.high %v1230, 0
        %v1261 = vunpack.c.l.s4 1983009808
        %v1262 = vunpack.c.0.s8 %v1261
        %v1263 = vlaneseq
        %v1264 = vshrl.u32 %v1263, 7
        %v1265 = vsub.s32 %v1262, %v1264
        %v1266 = vrot.slane %v1233, %v1265
        %v1267 = vcombine.high %v1266, 0
        %v1269 = vunpack.c.l.s4 1934713408
        %v1270 = vunpack.c.0.s8 %v1269
        %v1271 = vlaneseq
        %v1272 = vshrl.u32 %v1271, 7
        %v1273 = vsub.s32 %v1270, %v1272
        %v1274 = vrot.slane %v1266, %v1273
        %v1276 = vunpack.c.l.s4 1934713408
        %v1277 = vunpack.c.0.s8 %v1276
        %v1278 = vlaneseq
        %v1279 = vshrl.u32 %v1278, 7
        %v1280 = vsub.s32 %v1277, %v1279
        %v1281 = vrot.slane %v1267, %v1280
        %v1282 = vcombine.high %v1274, 0
        %v1283 = vcombine.high %v1281, 0
        %v1284 = vcombine.high %v1233, 0
        %v1287 = vpack.i.b16 %v1274, %v1249
        %v1289 = vshrl.u32 %v1249, 16
        %v1290 = vshrl.u32 %v1274, 16
        %v1291 = vpack.i.b16 %v1290, %v1289
        %v1295 = vpack.i.b16 %v1282, %v1257
        %v1297 = vshrl.u32 %v1257, 16
        %v1298 = vshrl.u32 %v1282, 16
        %v1299 = vpack.i.b16 %v1298, %v1297
        %v1303 = vpack.i.b16 %v1281, %v1256
        %v1305 = vshrl.u32 %v1256, 16
        %v1306 = vshrl.u32 %v1281, 16
        %v1307 = vpack.i.b16 %v1306, %v1305
        %v1311 = vpack.i.b16 %v1283, %v1258
        %v1313 = vshrl.u32 %v1258, 16
        %v1314 = vshrl.u32 %v1283, 16
        %v1315 = vpack.i.b16 %v1314, %v1313
        %v1319 = vpack.i.b16 %v1284, %v1259
        %v1320 = vcombine.low %v1287, %v1303
        %v1322 = vunpack.c.l.s4 1983009808
        %v1323 = vunpack.c.0.s8 %v1322
        %v1324 = vlaneseq
        %v1325 = vshrl.u32 %v1324, 7
        %v1326 = vsub.s32 %v1323, %v1325
        %v1327 = vrot.slane %v1320, %v1326
        %v1328 = vcombine.low %v1295, %v1311
        %v1330 = vunpack.c.l.s4 1983009808
        %v1331 = vunpack.c.0.s8 %v1330
        %v1332 = vlaneseq
        %v1333 = vshrl.u32 %v1332, 7
        %v1334 = vsub.s32 %v1331, %v1333
        %v1335 = vrot.slane %v1328, %v1334
        %v1336 = vcombine.low %v1327, %v1335
        %v1338 = vunpack.c.l.s4 1934713408
        %v1339 = vunpack.c.0.s8 %v1338
        %v1340 = vlaneseq
        %v1341 = vshrl.u32 %v1340, 7
        %v1342 = vsub.s32 %v1339, %v1341
        %v1343 = vrot.slane %v1336, %v1342
        %v1345 = vcombine.low %v1343, %v1319
        %v1346 = vcombine.low %v1291, %v1307
        %v1348 = vunpack.c.l.s4 1983009808
        %v1349 = vunpack.c.0.s8 %v1348
        %v1350 = vlaneseq
        %v1351 = vshrl.u32 %v1350, 7
        %v1352 = vsub.s32 %v1349, %v1351
        %v1353 = vrot.slane %v1346, %v1352
        %v1354 = vcombine.low %v1299, %v1315
        %v1356 = vunpack.c.l.s4 1983009808
        %v1357 = vunpack.c.0.s8 %v1356
        %v1358 = vlaneseq
        %v1359 = vshrl.u32 %v1358, 7
        %v1360 = vsub.s32 %v1357, %v1359
        %v1361 = vrot.slane %v1354, %v1360
        %v1362 = vcombine.low %v1353, %v1361
        %v1364 = vunpack.c.l.s4 1934713408
        %v1365 = vunpack.c.0.s8 %v1364
        %v1366 = vlaneseq
        %v1367 = vshrl.u32 %v1366, 7
        %v1368 = vsub.s32 %v1365, %v1367
        %v1369 = vrot.slane %v1362, %v1368
        %v1372 = vpack.i.b16 %v1369, %v1345
        %v1374 = vshrl.u32 %v1345, 16
        %v1375 = vshrl.u32 %v1369, 16
        %v1376 = vpack.i.b16 %v1375, %v1374
        %v1379 = vunpack.c.l.s4 1983009808
        %v1380 = vunpack.c.0.s8 %v1379
        %v1381 = vlaneseq
        %v1382 = vshrl.u32 %v1381, 7
        %v1383 = vsub.s32 %v1380, %v1382
        %v1384 = vrot.slane %v1372, %v1383
        %v1385 = vcombine.high %v1384, 0
        %v1387 = vunpack.c.l.s4 1934713408
        %v1388 = vunpack.c.0.s8 %v1387
        %v1389 = vlaneseq
        %v1390 = vshrl.u32 %v1389, 7
        %v1391 = vsub.s32 %v1388, %v1390
        %v1392 = vrot.slane %v1384, %v1391
        %v1394 = vunpack.c.l.s4 1934713408
        %v1395 = vunpack.c.0.s8 %v1394
        %v1396 = vlaneseq
        %v1397 = vshrl.u32 %v1396, 7
        %v1398 = vsub.s32 %v1395, %v1397
        %v1399 = vrot.slane %v1385, %v1398
        %v1400 = vcombine.high %v1392, 0
        %v1401 = vcombine.high %v1399, 0
        %v1402 = vcombine.high %v1372, 0
        %v1404 = vunpack.c.l.s4 1983009808
        %v1405 = vunpack.c.0.s8 %v1404
        %v1406 = vlaneseq
        %v1407 = vshrl.u32 %v1406, 7
        %v1408 = vsub.s32 %v1405, %v1407
        %v1409 = vrot.slane %v1376, %v1408
        %v1410 = vcombine.high %v1409, 0
        %v1412 = vunpack.c.l.s4 1934713408
        %v1413 = vunpack.c.0.s8 %v1412
        %v1414 = vlaneseq
        %v1415 = vshrl.u32 %v1414, 7
        %v1416 = vsub.s32 %v1413, %v1415
        %v1417 = vrot.slane %v1409, %v1416
        %v1419 = vunpack.c.l.s4 1934713408
        %v1420 = vunpack.c.0.s8 %v1419
        %v1421 = vlaneseq
        %v1422 = vshrl.u32 %v1421, 7
        %v1423 = vsub.s32 %v1420, %v1422
        %v1424 = vrot.slane %v1410, %v1423
        %v1425 = vcombine.high %v1417, 0
        %v1426 = vcombine.high %v1424, 0
        %v1427 = vcombine.high %v1376, 0
        %v1430 = vpack.i.b16 %v1417, %v1392
        %v1431 = vshrl.u32 %v1392, 16
        %v1432 = vshrl.u32 %v1417, 16
        %v1433 = vpack.i.b16 %v1432, %v1431
        %v1436 = vpack.i.b16 %v1425, %v1400
        %v1437 = vshrl.u32 %v1400, 16
        %v1438 = vshrl.u32 %v1425, 16
        %v1439 = vpack.i.b16 %v1438, %v1437
        %v1442 = vpack.i.b16 %v1424, %v1399
        %v1443 = vshrl.u32 %v1399, 16
        %v1444 = vshrl.u32 %v1424, 16
        %v1445 = vpack.i.b16 %v1444, %v1443
        %v1448 = vpack.i.b16 %v1426, %v1401
        %v1449 = vshrl.u32 %v1401, 16
        %v1450 = vshrl.u32 %v1426, 16
        %v1451 = vpack.i.b16 %v1450, %v1449
        %v1454 = vpack.i.b16 %v1427, %v1402
        %1455 = vrot.lane.b32.xlu0 %v1433, 16
        %v1456 = vpop.permute.xlu0 %1455
        %1457 = vrot.lane.b32.xlu0 %v1436, 32
        %v1458 = vpop.permute.xlu0 %1457
        %1459 = vrot.lane.b32.xlu0 %v1439, 48
        %v1460 = vpop.permute.xlu0 %1459
        %1461 = vrot.lane.b32.xlu0 %v1442, 64
        %v1462 = vpop.permute.xlu0 %1461
        %1463 = vrot.lane.b32.xlu0 %v1445, 80
        %v1464 = vpop.permute.xlu0 %1463
        %1465 = vrot.lane.b32.xlu0 %v1448, 96
        %v1466 = vpop.permute.xlu0 %1465
        %1467 = vrot.lane.b32.xlu0 %v1451, 112
        %v1468 = vpop.permute.xlu0 %1467
        %v1471 = vsel %vm863, %v1430, %v1456
        %v1473 = vsel %vm1212, %v1471, %v1458
        %v1475 = vsel %vm1215, %v1473, %v1460
        %v1477 = vsel %vm1218, %v1475, %v1462
        %v1479 = vsel %vm1221, %v1477, %v1464
        %v1481 = vsel %vm1224, %v1479, %v1466
        %v1483 = vsel %vm1227, %v1481, %v1468
        %v1484 = vld [vmem:[%s5] sm:$0x3]
        %v1485 = vld [vmem:[%s6] sm:$0x3]
        %vm1486 = vcmask 15360
        %v1488 = vsel %vm1486, %v1485, 0
        %vm1490 = vcmask 1040384
        %v1491 = vsel %vm1490, %v1483, 0
        %v1494 = vsel %vm1490, %v1454, 0
        %1496 = vmatprep.subr.bf16.mxu0 0
        %1497 = vmatpush1.bf16.msra.mxu0 0
        %1498 = vmatprep.subr.bf16.mxu0 0
        %1499 = vmatpush1.bf16.msra.mxu0 0
        %1500 = vmatprep.subr.bf16.mxu0 0
        %1501 = vmatpush1.bf16.msra.mxu0 0
        %1502 = vmatprep.subr.bf16.mxu0 0
        %1503 = vmatpush1.bf16.msra.mxu0 0
        %1504 = vmatprep.subr.bf16.mxu0 0
        %1505 = vmatpush1.bf16.msra.mxu0 0
        %1506 = vmatprep.subr.bf16.mxu0 0
        %1507 = vmatpush1.bf16.msra.mxu0 0
        %1508 = vmatprep.subr.bf16.mxu0 0
        %1509 = vmatpush1.bf16.msra.mxu0 0
        %1510 = vmatprep.subr.bf16.mxu0 %v1494
        %1511 = vmatpush1.bf16.msra.mxu0 %v1491
        %1512 = vmatprep.subr.bf16.mxu0 0
        %1513 = vmatpush2.bf16.msra.mxu0 0
        %1514 = vmatprep.subr.bf16.mxu0 0
        %1515 = vmatpush2.bf16.msra.mxu0 0
        %1516 = vmatprep.subr.bf16.mxu0 0
        %1517 = vmatpush2.bf16.msra.mxu0 0
        %1518 = vmatprep.subr.bf16.mxu0 0
        %1519 = vmatpush2.bf16.msra.mxu0 0
        %1520 = vmatprep.subr.bf16.mxu0 0
        %1521 = vmatpush2.bf16.msra.mxu0 0
        %1522 = vmatprep.subr.bf16.mxu0 0
        %1523 = vmatpush2.bf16.msra.mxu0 0
        %1524 = vmatprep.subr.bf16.mxu0 0
        %1525 = vmatpush2.bf16.msra.mxu0 0
        %1526 = vmatprep.subr.bf16.mxu0 0
        %1527 = vmatpush2.bf16.msra.mxu0 0
        %1528 = vmatprep.mubr.bf16.mxu0 0
        %1529 = vmatmul.mubr.bf16.gmra.mxu0 %v1488
        %v1530 = vpop.f32.mrf.mxu0
        %v1531 = vadd.f32 0.0, %v1530
        %v1532 = vpop.f32.mrf.mxu0
        %v1533 = vadd.f32 0.0, %v1532
        %v1534 = vpop.f32.mrf.mxu0
        %v1535 = vpop.f32.mrf.mxu0
        %1536 = vdwg.mxu0
        %v1538 = vsel %vm1486, %v1484, 0
        %v1540 = vsel %vm1490, %v1229, 0
        %v1543 = vsel %vm1490, %v1194, 0
        %1545 = vmatprep.subr.bf16.mxu0 0
        %1546 = vmatpush1.bf16.msra.mxu0 0
        %1547 = vmatprep.subr.bf16.mxu0 0
        %1548 = vmatpush1.bf16.msra.mxu0 0
        %1549 = vmatprep.subr.bf16.mxu0 0
        %1550 = vmatpush1.bf16.msra.mxu0 0
        %1551 = vmatprep.subr.bf16.mxu0 0
        %1552 = vmatpush1.bf16.msra.mxu0 0
        %1553 = vmatprep.subr.bf16.mxu0 0
        %1554 = vmatpush1.bf16.msra.mxu0 0
        %1555 = vmatprep.subr.bf16.mxu0 0
        %1556 = vmatpush1.bf16.msra.mxu0 0
        %1557 = vmatprep.subr.bf16.mxu0 0
        %1558 = vmatpush1.bf16.msra.mxu0 0
        %1559 = vmatprep.subr.bf16.mxu0 %v1543
        %1560 = vmatpush1.bf16.msra.mxu0 %v1540
        %1561 = vmatprep.subr.bf16.mxu0 0
        %1562 = vmatpush2.bf16.msra.mxu0 0
        %1563 = vmatprep.subr.bf16.mxu0 0
        %1564 = vmatpush2.bf16.msra.mxu0 0
        %1565 = vmatprep.subr.bf16.mxu0 0
        %1566 = vmatpush2.bf16.msra.mxu0 0
        %1567 = vmatprep.subr.bf16.mxu0 0
        %1568 = vmatpush2.bf16.msra.mxu0 0
        %1569 = vmatprep.subr.bf16.mxu0 0
        %1570 = vmatpush2.bf16.msra.mxu0 0
        %1571 = vmatprep.subr.bf16.mxu0 0
        %1572 = vmatpush2.bf16.msra.mxu0 0
        %1573 = vmatprep.subr.bf16.mxu0 0
        %1574 = vmatpush2.bf16.msra.mxu0 0
        %1575 = vmatprep.subr.bf16.mxu0 0
        %1576 = vmatpush2.bf16.msra.mxu0 0
        %1577 = vmatprep.mubr.bf16.mxu0 0
        %1578 = vmatmul.mubr.bf16.gmra.mxu0 %v1538
        %v1579 = vpop.f32.mrf.mxu0
        %v1580 = vadd.f32 %v1531, %v1579
        %v1581 = vpop.f32.mrf.mxu0
        %v1582 = vadd.f32 %v1533, %v1581
        %v1583 = vpop.f32.mrf.mxu0
        %v1584 = vpop.f32.mrf.mxu0
        %1585 = vdwg.mxu0
        %v1586 = vld [vmem:[%s7] sm:$0xf]
        %1588 = vset.pattern.permute.xlu0 0
        %1589 = vperm.xlu0 %1588, %v1586
        %v1590 = vpop.permute.xlu0 %1589
        %v1592 = vadd.f32 %v1580, %v1590
        %v1593 = vadd.f32 %v1582, %v1590
        %v1594 = vmax.f32 %v1592, 0.0
        %v1595 = vmax.f32 %v1593, 0.0
        %v1596 = vpack.c.bf16 %v1594, %v1594
        %v1597 = vpack.c.bf16 %v1595, %v1595
        %1599 = vrot.lane.b32.xlu0 %v1596, 112
        %v1600 = vpop.permute.xlu0 %1599
        %1602 = vrot.lane.b32.xlu0 %v1596, 96
        %v1603 = vpop.permute.xlu0 %1602
        %1605 = vrot.lane.b32.xlu0 %v1596, 80
        %v1606 = vpop.permute.xlu0 %1605
        %1608 = vrot.lane.b32.xlu0 %v1596, 64
        %v1609 = vpop.permute.xlu0 %1608
        %1611 = vrot.lane.b32.xlu0 %v1596, 48
        %v1612 = vpop.permute.xlu0 %1611
        %1614 = vrot.lane.b32.xlu0 %v1596, 32
        %v1615 = vpop.permute.xlu0 %1614
        %1617 = vrot.lane.b32.xlu0 %v1596, 16
        %v1618 = vpop.permute.xlu0 %1617
        %v1620 = vcombine.low %v1596, %v1609
        %v1622 = vunpack.c.l.s4 1983009808
        %v1623 = vunpack.c.0.s8 %v1622
        %v1624 = vlaneseq
        %v1625 = vshrl.u32 %v1624, 7
        %v1626 = vsub.s32 %v1623, %v1625
        %v1627 = vrot.slane %v1620, %v1626
        %v1628 = vcombine.low %v1603, %v1615
        %v1630 = vunpack.c.l.s4 1983009808
        %v1631 = vunpack.c.0.s8 %v1630
        %v1632 = vlaneseq
        %v1633 = vshrl.u32 %v1632, 7
        %v1634 = vsub.s32 %v1631, %v1633
        %v1635 = vrot.slane %v1628, %v1634
        %v1636 = vcombine.low %v1627, %v1635
        %v1638 = vunpack.c.l.s4 1934713408
        %v1639 = vunpack.c.0.s8 %v1638
        %v1640 = vlaneseq
        %v1641 = vshrl.u32 %v1640, 7
        %v1642 = vsub.s32 %v1639, %v1641
        %v1643 = vrot.slane %v1636, %v1642
        %v1644 = vcombine.low %v1643, %v1597
        %v1645 = vcombine.low %v1600, %v1612
        %v1647 = vunpack.c.l.s4 1983009808
        %v1648 = vunpack.c.0.s8 %v1647
        %v1649 = vlaneseq
        %v1650 = vshrl.u32 %v1649, 7
        %v1651 = vsub.s32 %v1648, %v1650
        %v1652 = vrot.slane %v1645, %v1651
        %v1653 = vcombine.low %v1606, %v1618
        %v1655 = vunpack.c.l.s4 1983009808
        %v1656 = vunpack.c.0.s8 %v1655
        %v1657 = vlaneseq
        %v1658 = vshrl.u32 %v1657, 7
        %v1659 = vsub.s32 %v1656, %v1658
        %v1660 = vrot.slane %v1653, %v1659
        %v1661 = vcombine.low %v1652, %v1660
        %v1663 = vunpack.c.l.s4 1934713408
        %v1664 = vunpack.c.0.s8 %v1663
        %v1665 = vlaneseq
        %v1666 = vshrl.u32 %v1665, 7
        %v1667 = vsub.s32 %v1664, %v1666
        %v1668 = vrot.slane %v1661, %v1667
        %v1671 = vpack.i.b16 %v1668, %v1644
        %v1673 = vshrl.u32 %v1644, 16
        %v1674 = vshrl.u32 %v1668, 16
        %v1675 = vpack.i.b16 %v1674, %v1673
        %v1678 = vunpack.c.l.s4 1983009808
        %v1679 = vunpack.c.0.s8 %v1678
        %v1680 = vlaneseq
        %v1681 = vshrl.u32 %v1680, 7
        %v1682 = vsub.s32 %v1679, %v1681
        %v1683 = vrot.slane %v1671, %v1682
        %v1684 = vcombine.high %v1683, 0
        %v1686 = vunpack.c.l.s4 1934713408
        %v1687 = vunpack.c.0.s8 %v1686
        %v1688 = vlaneseq
        %v1689 = vshrl.u32 %v1688, 7
        %v1690 = vsub.s32 %v1687, %v1689
        %v1691 = vrot.slane %v1683, %v1690
        %v1693 = vunpack.c.l.s4 1934713408
        %v1694 = vunpack.c.0.s8 %v1693
        %v1695 = vlaneseq
        %v1696 = vshrl.u32 %v1695, 7
        %v1697 = vsub.s32 %v1694, %v1696
        %v1698 = vrot.slane %v1684, %v1697
        %v1699 = vcombine.high %v1691, 0
        %v1700 = vcombine.high %v1698, 0
        %v1701 = vcombine.high %v1671, 0
        %v1703 = vunpack.c.l.s4 1983009808
        %v1704 = vunpack.c.0.s8 %v1703
        %v1705 = vlaneseq
        %v1706 = vshrl.u32 %v1705, 7
        %v1707 = vsub.s32 %v1704, %v1706
        %v1708 = vrot.slane %v1675, %v1707
        %v1709 = vcombine.high %v1708, 0
        %v1711 = vunpack.c.l.s4 1934713408
        %v1712 = vunpack.c.0.s8 %v1711
        %v1713 = vlaneseq
        %v1714 = vshrl.u32 %v1713, 7
        %v1715 = vsub.s32 %v1712, %v1714
        %v1716 = vrot.slane %v1708, %v1715
        %v1718 = vunpack.c.l.s4 1934713408
        %v1719 = vunpack.c.0.s8 %v1718
        %v1720 = vlaneseq
        %v1721 = vshrl.u32 %v1720, 7
        %v1722 = vsub.s32 %v1719, %v1721
        %v1723 = vrot.slane %v1709, %v1722
        %v1724 = vcombine.high %v1716, 0
        %v1725 = vcombine.high %v1723, 0
        %v1726 = vcombine.high %v1675, 0
        %v1729 = vpack.i.b16 %v1716, %v1691
        %v1731 = vshrl.u32 %v1691, 16
        %v1732 = vshrl.u32 %v1716, 16
        %v1733 = vpack.i.b16 %v1732, %v1731
        %v1737 = vpack.i.b16 %v1724, %v1699
        %v1739 = vshrl.u32 %v1699, 16
        %v1740 = vshrl.u32 %v1724, 16
        %v1741 = vpack.i.b16 %v1740, %v1739
        %v1745 = vpack.i.b16 %v1723, %v1698
        %v1747 = vshrl.u32 %v1698, 16
        %v1748 = vshrl.u32 %v1723, 16
        %v1749 = vpack.i.b16 %v1748, %v1747
        %v1753 = vpack.i.b16 %v1725, %v1700
        %v1755 = vshrl.u32 %v1700, 16
        %v1756 = vshrl.u32 %v1725, 16
        %v1757 = vpack.i.b16 %v1756, %v1755
        %v1761 = vpack.i.b16 %v1726, %v1701
        %v1762 = vcombine.low %v1729, %v1745
        %v1764 = vunpack.c.l.s4 1983009808
        %v1765 = vunpack.c.0.s8 %v1764
        %v1766 = vlaneseq
        %v1767 = vshrl.u32 %v1766, 7
        %v1768 = vsub.s32 %v1765, %v1767
        %v1769 = vrot.slane %v1762, %v1768
        %v1770 = vcombine.low %v1737, %v1753
        %v1772 = vunpack.c.l.s4 1983009808
        %v1773 = vunpack.c.0.s8 %v1772
        %v1774 = vlaneseq
        %v1775 = vshrl.u32 %v1774, 7
        %v1776 = vsub.s32 %v1773, %v1775
        %v1777 = vrot.slane %v1770, %v1776
        %v1778 = vcombine.low %v1769, %v1777
        %v1780 = vunpack.c.l.s4 1934713408
        %v1781 = vunpack.c.0.s8 %v1780
        %v1782 = vlaneseq
        %v1783 = vshrl.u32 %v1782, 7
        %v1784 = vsub.s32 %v1781, %v1783
        %v1785 = vrot.slane %v1778, %v1784
        %v1787 = vcombine.low %v1785, %v1761
        %v1788 = vcombine.low %v1733, %v1749
        %v1790 = vunpack.c.l.s4 1983009808
        %v1791 = vunpack.c.0.s8 %v1790
        %v1792 = vlaneseq
        %v1793 = vshrl.u32 %v1792, 7
        %v1794 = vsub.s32 %v1791, %v1793
        %v1795 = vrot.slane %v1788, %v1794
        %v1796 = vcombine.low %v1741, %v1757
        %v1798 = vunpack.c.l.s4 1983009808
        %v1799 = vunpack.c.0.s8 %v1798
        %v1800 = vlaneseq
        %v1801 = vshrl.u32 %v1800, 7
        %v1802 = vsub.s32 %v1799, %v1801
        %v1803 = vrot.slane %v1796, %v1802
        %v1804 = vcombine.low %v1795, %v1803
        %v1806 = vunpack.c.l.s4 1934713408
        %v1807 = vunpack.c.0.s8 %v1806
        %v1808 = vlaneseq
        %v1809 = vshrl.u32 %v1808, 7
        %v1810 = vsub.s32 %v1807, %v1809
        %v1811 = vrot.slane %v1804, %v1810
        %v1814 = vpack.i.b16 %v1811, %v1787
        %v1815 = vshrl.u32 %v1787, 16
        %v1816 = vshrl.u32 %v1811, 16
        %v1817 = vpack.i.b16 %v1816, %v1815
        %1818 = vrot.lane.b32.xlu0 %v1817, 16
        %v1819 = vpop.permute.xlu0 %1818
        %v1822 = vsel %vm863, %v1814, %v1819
        %v1824 = vrot.slane %v1596, 1
        %v1825 = vrot.slane %v1600, 1
        %v1826 = vrot.slane %v1603, 1
        %v1827 = vrot.slane %v1606, 1
        %v1828 = vrot.slane %v1609, 1
        %v1829 = vrot.slane %v1612, 1
        %v1830 = vrot.slane %v1615, 1
        %v1831 = vrot.slane %v1618, 1
        %v1832 = vrot.slane %v1597, 1
        %v1841 = vcombine.low %v1824, %v1828
        %v1843 = vunpack.c.l.s4 1983009808
        %v1844 = vunpack.c.0.s8 %v1843
        %v1845 = vlaneseq
        %v1846 = vshrl.u32 %v1845, 7
        %v1847 = vsub.s32 %v1844, %v1846
        %v1848 = vrot.slane %v1841, %v1847
        %v1849 = vcombine.low %v1826, %v1830
        %v1851 = vunpack.c.l.s4 1983009808
        %v1852 = vunpack.c.0.s8 %v1851
        %v1853 = vlaneseq
        %v1854 = vshrl.u32 %v1853, 7
        %v1855 = vsub.s32 %v1852, %v1854
        %v1856 = vrot.slane %v1849, %v1855
        %v1857 = vcombine.low %v1848, %v1856
        %v1859 = vunpack.c.l.s4 1934713408
        %v1860 = vunpack.c.0.s8 %v1859
        %v1861 = vlaneseq
        %v1862 = vshrl.u32 %v1861, 7
        %v1863 = vsub.s32 %v1860, %v1862
        %v1864 = vrot.slane %v1857, %v1863
        %v1866 = vcombine.low %v1864, %v1832
        %v1867 = vcombine.low %v1825, %v1829
        %v1869 = vunpack.c.l.s4 1983009808
        %v1870 = vunpack.c.0.s8 %v1869
        %v1871 = vlaneseq
        %v1872 = vshrl.u32 %v1871, 7
        %v1873 = vsub.s32 %v1870, %v1872
        %v1874 = vrot.slane %v1867, %v1873
        %v1875 = vcombine.low %v1827, %v1831
        %v1877 = vunpack.c.l.s4 1983009808
        %v1878 = vunpack.c.0.s8 %v1877
        %v1879 = vlaneseq
        %v1880 = vshrl.u32 %v1879, 7
        %v1881 = vsub.s32 %v1878, %v1880
        %v1882 = vrot.slane %v1875, %v1881
        %v1883 = vcombine.low %v1874, %v1882
        %v1885 = vunpack.c.l.s4 1934713408
        %v1886 = vunpack.c.0.s8 %v1885
        %v1887 = vlaneseq
        %v1888 = vshrl.u32 %v1887, 7
        %v1889 = vsub.s32 %v1886, %v1888
        %v1890 = vrot.slane %v1883, %v1889
        %v1893 = vpack.i.b16 %v1890, %v1866
        %v1895 = vshrl.u32 %v1866, 16
        %v1896 = vshrl.u32 %v1890, 16
        %v1897 = vpack.i.b16 %v1896, %v1895
        %v1900 = vunpack.c.l.s4 1983009808
        %v1901 = vunpack.c.0.s8 %v1900
        %v1902 = vlaneseq
        %v1903 = vshrl.u32 %v1902, 7
        %v1904 = vsub.s32 %v1901, %v1903
        %v1905 = vrot.slane %v1893, %v1904
        %v1906 = vcombine.high %v1905, 0
        %v1908 = vunpack.c.l.s4 1934713408
        %v1909 = vunpack.c.0.s8 %v1908
        %v1910 = vlaneseq
        %v1911 = vshrl.u32 %v1910, 7
        %v1912 = vsub.s32 %v1909, %v1911
        %v1913 = vrot.slane %v1905, %v1912
        %v1915 = vunpack.c.l.s4 1934713408
        %v1916 = vunpack.c.0.s8 %v1915
        %v1917 = vlaneseq
        %v1918 = vshrl.u32 %v1917, 7
        %v1919 = vsub.s32 %v1916, %v1918
        %v1920 = vrot.slane %v1906, %v1919
        %v1921 = vcombine.high %v1913, 0
        %v1922 = vcombine.high %v1920, 0
        %v1923 = vcombine.high %v1893, 0
        %v1925 = vunpack.c.l.s4 1983009808
        %v1926 = vunpack.c.0.s8 %v1925
        %v1927 = vlaneseq
        %v1928 = vshrl.u32 %v1927, 7
        %v1929 = vsub.s32 %v1926, %v1928
        %v1930 = vrot.slane %v1897, %v1929
        %v1931 = vcombine.high %v1930, 0
        %v1933 = vunpack.c.l.s4 1934713408
        %v1934 = vunpack.c.0.s8 %v1933
        %v1935 = vlaneseq
        %v1936 = vshrl.u32 %v1935, 7
        %v1937 = vsub.s32 %v1934, %v1936
        %v1938 = vrot.slane %v1930, %v1937
        %v1940 = vunpack.c.l.s4 1934713408
        %v1941 = vunpack.c.0.s8 %v1940
        %v1942 = vlaneseq
        %v1943 = vshrl.u32 %v1942, 7
        %v1944 = vsub.s32 %v1941, %v1943
        %v1945 = vrot.slane %v1931, %v1944
        %v1946 = vcombine.high %v1938, 0
        %v1947 = vcombine.high %v1945, 0
        %v1948 = vcombine.high %v1897, 0
        %v1951 = vpack.i.b16 %v1938, %v1913
        %v1953 = vshrl.u32 %v1913, 16
        %v1954 = vshrl.u32 %v1938, 16
        %v1955 = vpack.i.b16 %v1954, %v1953
        %v1959 = vpack.i.b16 %v1946, %v1921
        %v1961 = vshrl.u32 %v1921, 16
        %v1962 = vshrl.u32 %v1946, 16
        %v1963 = vpack.i.b16 %v1962, %v1961
        %v1967 = vpack.i.b16 %v1945, %v1920
        %v1969 = vshrl.u32 %v1920, 16
        %v1970 = vshrl.u32 %v1945, 16
        %v1971 = vpack.i.b16 %v1970, %v1969
        %v1975 = vpack.i.b16 %v1947, %v1922
        %v1977 = vshrl.u32 %v1922, 16
        %v1978 = vshrl.u32 %v1947, 16
        %v1979 = vpack.i.b16 %v1978, %v1977
        %v1983 = vpack.i.b16 %v1948, %v1923
        %v1984 = vcombine.low %v1951, %v1967
        %v1986 = vunpack.c.l.s4 1983009808
        %v1987 = vunpack.c.0.s8 %v1986
        %v1988 = vlaneseq
        %v1989 = vshrl.u32 %v1988, 7
        %v1990 = vsub.s32 %v1987, %v1989
        %v1991 = vrot.slane %v1984, %v1990
        %v1992 = vcombine.low %v1959, %v1975
        %v1994 = vunpack.c.l.s4 1983009808
        %v1995 = vunpack.c.0.s8 %v1994
        %v1996 = vlaneseq
        %v1997 = vshrl.u32 %v1996, 7
        %v1998 = vsub.s32 %v1995, %v1997
        %v1999 = vrot.slane %v1992, %v1998
        %v2000 = vcombine.low %v1991, %v1999
        %v2002 = vunpack.c.l.s4 1934713408
        %v2003 = vunpack.c.0.s8 %v2002
        %v2004 = vlaneseq
        %v2005 = vshrl.u32 %v2004, 7
        %v2006 = vsub.s32 %v2003, %v2005
        %v2007 = vrot.slane %v2000, %v2006
        %v2009 = vcombine.low %v2007, %v1983
        %v2010 = vcombine.low %v1955, %v1971
        %v2012 = vunpack.c.l.s4 1983009808
        %v2013 = vunpack.c.0.s8 %v2012
        %v2014 = vlaneseq
        %v2015 = vshrl.u32 %v2014, 7
        %v2016 = vsub.s32 %v2013, %v2015
        %v2017 = vrot.slane %v2010, %v2016
        %v2018 = vcombine.low %v1963, %v1979
        %v2020 = vunpack.c.l.s4 1983009808
        %v2021 = vunpack.c.0.s8 %v2020
        %v2022 = vlaneseq
        %v2023 = vshrl.u32 %v2022, 7
        %v2024 = vsub.s32 %v2021, %v2023
        %v2025 = vrot.slane %v2018, %v2024
        %v2026 = vcombine.low %v2017, %v2025
        %v2028 = vunpack.c.l.s4 1934713408
        %v2029 = vunpack.c.0.s8 %v2028
        %v2030 = vlaneseq
        %v2031 = vshrl.u32 %v2030, 7
        %v2032 = vsub.s32 %v2029, %v2031
        %v2033 = vrot.slane %v2026, %v2032
        %v2036 = vpack.i.b16 %v2033, %v2009
        %v2037 = vshrl.u32 %v2009, 16
        %v2038 = vshrl.u32 %v2033, 16
        %v2039 = vpack.i.b16 %v2038, %v2037
        %2040 = vrot.lane.b32.xlu0 %v2039, 16
        %v2041 = vpop.permute.xlu0 %2040
        %v2044 = vsel %vm863, %v2036, %v2041
        %v2045 = vld [vmem:[#allocation7] sm:$0xf]
        %v2046 = vld [vmem:[#allocation7 + $0x4] sm:$0xf]
        %v2047 = vld [vmem:[%s9] sm:$0xf]
        %v2048 = vld [vmem:[%s9 + $0x4] sm:$0xf]
        %v2051 = vunpack.c.l.b16 %v2047
        %v2052 = vunpack.c.l.b16 %v2048
        %v2053 = vpack.c.b16 %v2052, %v2051
        %vm2054 = vcmask 72704
        %v2056 = vsel %vm2054, %v2053, 0
        %vm2058 = vcmask 1043456
        %vm2059 = vcmask 1044480
        %v2060 = vsel %vm2058, 4294967295, 65535
        %v2061 = vsel %vm2059, %v2060, 0
        %v2062 = vand.u32 %v2044, %v2061
        %2064 = vmatprep.subr.bf16.mxu0 0
        %2065 = vmatpush1.bf16.msra.mxu0 0
        %2066 = vmatprep.subr.bf16.mxu0 0
        %2067 = vmatpush1.bf16.msra.mxu0 0
        %2068 = vmatprep.subr.bf16.mxu0 0
        %2069 = vmatpush1.bf16.msra.mxu0 0
        %2070 = vmatprep.subr.bf16.mxu0 0
        %2071 = vmatpush1.bf16.msra.mxu0 0
        %2072 = vmatprep.subr.bf16.mxu0 0
        %2073 = vmatpush1.bf16.msra.mxu0 0
        %2074 = vmatprep.subr.bf16.mxu0 0
        %2075 = vmatpush1.bf16.msra.mxu0 0
        %2076 = vmatprep.subr.bf16.mxu0 0
        %2077 = vmatpush1.bf16.msra.mxu0 0
        %2078 = vmatprep.subr.bf16.mxu0 0
        %2079 = vmatpush1.bf16.msra.mxu0 %v2062
        %2080 = vmatprep.subr.bf16.mxu0 0
        %2081 = vmatpush2.bf16.msra.mxu0 0
        %2082 = vmatprep.subr.bf16.mxu0 0
        %2083 = vmatpush2.bf16.msra.mxu0 0
        %2084 = vmatprep.subr.bf16.mxu0 0
        %2085 = vmatpush2.bf16.msra.mxu0 0
        %2086 = vmatprep.subr.bf16.mxu0 0
        %2087 = vmatpush2.bf16.msra.mxu0 0
        %2088 = vmatprep.subr.bf16.mxu0 0
        %2089 = vmatpush2.bf16.msra.mxu0 0
        %2090 = vmatprep.subr.bf16.mxu0 0
        %2091 = vmatpush2.bf16.msra.mxu0 0
        %2092 = vmatprep.subr.bf16.mxu0 0
        %2093 = vmatpush2.bf16.msra.mxu0 0
        %2094 = vmatprep.subr.bf16.mxu0 0
        %2095 = vmatpush2.bf16.msra.mxu0 0
        %2096 = vmatprep.mubr.bf16.mxu0 0
        %2097 = vmatmul.mubr.bf16.gmra.mxu0 %v2056
        %v2098 = vpop.f32.mrf.mxu0
        %v2099 = vadd.f32 0.0, %v2098
        %v2100 = vpop.f32.mrf.mxu0
        %v2101 = vpop.f32.mrf.mxu0
        %v2102 = vadd.f32 0.0, %v2101
        %v2103 = vpop.f32.mrf.mxu0
        %2104 = vdwg.mxu0
        %v2107 = vunpack.c.l.b16 %v2045
        %v2108 = vunpack.c.l.b16 %v2046
        %v2109 = vpack.c.b16 %v2108, %v2107
        %v2111 = vsel %vm2054, %v2109, 0
        %v2113 = vand.u32 %v1822, %v2061
        %2115 = vmatprep.subr.bf16.mxu0 0
        %2116 = vmatpush1.bf16.msra.mxu0 0
        %2117 = vmatprep.subr.bf16.mxu0 0
        %2118 = vmatpush1.bf16.msra.mxu0 0
        %2119 = vmatprep.subr.bf16.mxu0 0
        %2120 = vmatpush1.bf16.msra.mxu0 0
        %2121 = vmatprep.subr.bf16.mxu0 0
        %2122 = vmatpush1.bf16.msra.mxu0 0
        %2123 = vmatprep.subr.bf16.mxu0 0
        %2124 = vmatpush1.bf16.msra.mxu0 0
        %2125 = vmatprep.subr.bf16.mxu0 0
        %2126 = vmatpush1.bf16.msra.mxu0 0
        %2127 = vmatprep.subr.bf16.mxu0 0
        %2128 = vmatpush1.bf16.msra.mxu0 0
        %2129 = vmatprep.subr.bf16.mxu0 0
        %2130 = vmatpush1.bf16.msra.mxu0 %v2113
        %2131 = vmatprep.subr.bf16.mxu0 0
        %2132 = vmatpush2.bf16.msra.mxu0 0
        %2133 = vmatprep.subr.bf16.mxu0 0
        %2134 = vmatpush2.bf16.msra.mxu0 0
        %2135 = vmatprep.subr.bf16.mxu0 0
        %2136 = vmatpush2.bf16.msra.mxu0 0
        %2137 = vmatprep.subr.bf16.mxu0 0
        %2138 = vmatpush2.bf16.msra.mxu0 0
        %2139 = vmatprep.subr.bf16.mxu0 0
        %2140 = vmatpush2.bf16.msra.mxu0 0
        %2141 = vmatprep.subr.bf16.mxu0 0
        %2142 = vmatpush2.bf16.msra.mxu0 0
        %2143 = vmatprep.subr.bf16.mxu0 0
        %2144 = vmatpush2.bf16.msra.mxu0 0
        %2145 = vmatprep.subr.bf16.mxu0 0
        %2146 = vmatpush2.bf16.msra.mxu0 0
        %2147 = vmatprep.mubr.bf16.mxu0 0
        %2148 = vmatmul.mubr.bf16.gmra.mxu0 %v2111
        %v2149 = vpop.f32.mrf.mxu0
        %v2150 = vadd.f32 %v2099, %v2149
        %v2151 = vpop.f32.mrf.mxu0
        %v2152 = vpop.f32.mrf.mxu0
        %v2153 = vadd.f32 %v2102, %v2152
        %v2154 = vpop.f32.mrf.mxu0
        %2155 = vdwg.mxu0
        %v2156 = vpack.c.bf16 %v2153, %v2150
        %2158 = vrot.lane.b32.xlu0 %v2156, 112
        %v2159 = vpop.permute.xlu0 %2158
        %v2162 = vpack.i.b16 %v2159, %v2156
        %v2164 = vshrl.u32 %v2156, 16
        %v2165 = vshrl.u32 %v2159, 16
        %v2166 = vpack.i.b16 %v2165, %v2164
        %v2168 = vcombine.high %v2162, %v654
        %v2170 = vunpack.c.l.s4 1983009808
        %v2171 = vunpack.c.0.s8 %v2170
        %v2172 = vlaneseq
        %v2173 = vshrl.u32 %v2172, 7
        %v2174 = vsub.s32 %v2171, %v2173
        %v2175 = vrot.slane %v2162, %v2174
        %v2177 = vunpack.c.l.s4 1983009808
        %v2178 = vunpack.c.0.s8 %v2177
        %v2179 = vlaneseq
        %v2180 = vshrl.u32 %v2179, 7
        %v2181 = vsub.s32 %v2178, %v2180
        %v2182 = vrot.slane %v2168, %v2181
        %v2183 = vcombine.high %v2175, 0
        %v2185 = vunpack.c.l.s4 1934713408
        %v2186 = vunpack.c.0.s8 %v2185
        %v2187 = vlaneseq
        %v2188 = vshrl.u32 %v2187, 7
        %v2189 = vsub.s32 %v2186, %v2188
        %v2190 = vrot.slane %v2175, %v2189
        %v2192 = vunpack.c.l.s4 1934713408
        %v2193 = vunpack.c.0.s8 %v2192
        %v2194 = vlaneseq
        %v2195 = vshrl.u32 %v2194, 7
        %v2196 = vsub.s32 %v2193, %v2195
        %v2197 = vrot.slane %v2183, %v2196
        %v2198 = vcombine.high %v2182, 0
        %v2200 = vunpack.c.l.s4 1934713408
        %v2201 = vunpack.c.0.s8 %v2200
        %v2202 = vlaneseq
        %v2203 = vshrl.u32 %v2202, 7
        %v2204 = vsub.s32 %v2201, %v2203
        %v2205 = vrot.slane %v2182, %v2204
        %v2207 = vunpack.c.l.s4 1934713408
        %v2208 = vunpack.c.0.s8 %v2207
        %v2209 = vlaneseq
        %v2210 = vshrl.u32 %v2209, 7
        %v2211 = vsub.s32 %v2208, %v2210
        %v2212 = vrot.slane %v2198, %v2211
        %v2213 = vcombine.high %v2190, 0
        %v2214 = vcombine.high %v2197, 0
        %v2215 = vcombine.high %v2205, 0
        %v2216 = vcombine.high %v2212, 0
        %v2217 = vcombine.high %v2166, %v657
        %v2219 = vunpack.c.l.s4 1983009808
        %v2220 = vunpack.c.0.s8 %v2219
        %v2221 = vlaneseq
        %v2222 = vshrl.u32 %v2221, 7
        %v2223 = vsub.s32 %v2220, %v2222
        %v2224 = vrot.slane %v2166, %v2223
        %v2226 = vunpack.c.l.s4 1983009808
        %v2227 = vunpack.c.0.s8 %v2226
        %v2228 = vlaneseq
        %v2229 = vshrl.u32 %v2228, 7
        %v2230 = vsub.s32 %v2227, %v2229
        %v2231 = vrot.slane %v2217, %v2230
        %v2232 = vcombine.high %v2224, 0
        %v2234 = vunpack.c.l.s4 1934713408
        %v2235 = vunpack.c.0.s8 %v2234
        %v2236 = vlaneseq
        %v2237 = vshrl.u32 %v2236, 7
        %v2238 = vsub.s32 %v2235, %v2237
        %v2239 = vrot.slane %v2224, %v2238
        %v2241 = vunpack.c.l.s4 1934713408
        %v2242 = vunpack.c.0.s8 %v2241
        %v2243 = vlaneseq
        %v2244 = vshrl.u32 %v2243, 7
        %v2245 = vsub.s32 %v2242, %v2244
        %v2246 = vrot.slane %v2232, %v2245
        %v2247 = vcombine.high %v2231, 0
        %v2249 = vunpack.c.l.s4 1934713408
        %v2250 = vunpack.c.0.s8 %v2249
        %v2251 = vlaneseq
        %v2252 = vshrl.u32 %v2251, 7
        %v2253 = vsub.s32 %v2250, %v2252
        %v2254 = vrot.slane %v2231, %v2253
        %v2256 = vunpack.c.l.s4 1934713408
        %v2257 = vunpack.c.0.s8 %v2256
        %v2258 = vlaneseq
        %v2259 = vshrl.u32 %v2258, 7
        %v2260 = vsub.s32 %v2257, %v2259
        %v2261 = vrot.slane %v2247, %v2260
        %v2262 = vcombine.high %v2239, 0
        %v2263 = vcombine.high %v2246, 0
        %v2264 = vcombine.high %v2254, 0
        %v2265 = vcombine.high %v2261, 0
        %v2266 = vcombine.low %v2190, %v2197
        %v2268 = vunpack.c.l.s4 1983009808
        %v2269 = vunpack.c.0.s8 %v2268
        %v2270 = vlaneseq
        %v2271 = vshrl.u32 %v2270, 7
        %v2272 = vsub.s32 %v2269, %v2271
        %v2273 = vrot.slane %v2266, %v2272
        %v2274 = vcombine.low %v2213, %v2214
        %v2276 = vunpack.c.l.s4 1983009808
        %v2277 = vunpack.c.0.s8 %v2276
        %v2278 = vlaneseq
        %v2279 = vshrl.u32 %v2278, 7
        %v2280 = vsub.s32 %v2277, %v2279
        %v2281 = vrot.slane %v2274, %v2280
        %v2282 = vcombine.low %v2205, %v2212
        %v2284 = vunpack.c.l.s4 1983009808
        %v2285 = vunpack.c.0.s8 %v2284
        %v2286 = vlaneseq
        %v2287 = vshrl.u32 %v2286, 7
        %v2288 = vsub.s32 %v2285, %v2287
        %v2289 = vrot.slane %v2282, %v2288
        %v2290 = vcombine.low %v2215, %v2216
        %v2292 = vunpack.c.l.s4 1983009808
        %v2293 = vunpack.c.0.s8 %v2292
        %v2294 = vlaneseq
        %v2295 = vshrl.u32 %v2294, 7
        %v2296 = vsub.s32 %v2293, %v2295
        %v2297 = vrot.slane %v2290, %v2296
        %v2298 = vcombine.low %v2273, %v2281
        %v2300 = vunpack.c.l.s4 1934713408
        %v2301 = vunpack.c.0.s8 %v2300
        %v2302 = vlaneseq
        %v2303 = vshrl.u32 %v2302, 7
        %v2304 = vsub.s32 %v2301, %v2303
        %v2305 = vrot.slane %v2298, %v2304
        %v2306 = vcombine.low %v2289, %v2297
        %v2308 = vunpack.c.l.s4 1934713408
        %v2309 = vunpack.c.0.s8 %v2308
        %v2310 = vlaneseq
        %v2311 = vshrl.u32 %v2310, 7
        %v2312 = vsub.s32 %v2309, %v2311
        %v2313 = vrot.slane %v2306, %v2312
        %v2314 = vcombine.low %v2305, %v2313
        %v2315 = vcombine.low %v2239, %v2246
        %v2317 = vunpack.c.l.s4 1983009808
        %v2318 = vunpack.c.0.s8 %v2317
        %v2319 = vlaneseq
        %v2320 = vshrl.u32 %v2319, 7
        %v2321 = vsub.s32 %v2318, %v2320
        %v2322 = vrot.slane %v2315, %v2321
        %v2323 = vcombine.low %v2262, %v2263
        %v2325 = vunpack.c.l.s4 1983009808
        %v2326 = vunpack.c.0.s8 %v2325
        %v2327 = vlaneseq
        %v2328 = vshrl.u32 %v2327, 7
        %v2329 = vsub.s32 %v2326, %v2328
        %v2330 = vrot.slane %v2323, %v2329
        %v2331 = vcombine.low %v2254, %v2261
        %v2333 = vunpack.c.l.s4 1983009808
        %v2334 = vunpack.c.0.s8 %v2333
        %v2335 = vlaneseq
        %v2336 = vshrl.u32 %v2335, 7
        %v2337 = vsub.s32 %v2334, %v2336
        %v2338 = vrot.slane %v2331, %v2337
        %v2339 = vcombine.low %v2264, %v2265
        %v2341 = vunpack.c.l.s4 1983009808
        %v2342 = vunpack.c.0.s8 %v2341
        %v2343 = vlaneseq
        %v2344 = vshrl.u32 %v2343, 7
        %v2345 = vsub.s32 %v2342, %v2344
        %v2346 = vrot.slane %v2339, %v2345
        %v2347 = vcombine.low %v2322, %v2330
        %v2349 = vunpack.c.l.s4 1934713408
        %v2350 = vunpack.c.0.s8 %v2349
        %v2351 = vlaneseq
        %v2352 = vshrl.u32 %v2351, 7
        %v2353 = vsub.s32 %v2350, %v2352
        %v2354 = vrot.slane %v2347, %v2353
        %v2355 = vcombine.low %v2338, %v2346
        %v2357 = vunpack.c.l.s4 1934713408
        %v2358 = vunpack.c.0.s8 %v2357
        %v2359 = vlaneseq
        %v2360 = vshrl.u32 %v2359, 7
        %v2361 = vsub.s32 %v2358, %v2360
        %v2362 = vrot.slane %v2355, %v2361
        %v2363 = vcombine.low %v2354, %v2362
        %v2366 = vpack.i.b16 %v2363, %v2314
        %v2367 = vshrl.u32 %v2314, 16
        %v2368 = vshrl.u32 %v2363, 16
        %v2369 = vpack.i.b16 %v2368, %v2367
        %v2372 = vpack.i.b16 %v2369, %v2366
        %v2374 = vshrl.u32 %v2366, 16
        %v2375 = vshrl.u32 %v2369, 16
        %v2376 = vpack.i.b16 %v2375, %v2374
        %v2378 = vcombine.high %v2372, %v654
        %v2380 = vunpack.c.l.s4 1983009808
        %v2381 = vunpack.c.0.s8 %v2380
        %v2382 = vlaneseq
        %v2383 = vshrl.u32 %v2382, 7
        %v2384 = vsub.s32 %v2381, %v2383
        %v2385 = vrot.slane %v2372, %v2384
        %v2387 = vunpack.c.l.s4 1983009808
        %v2388 = vunpack.c.0.s8 %v2387
        %v2389 = vlaneseq
        %v2390 = vshrl.u32 %v2389, 7
        %v2391 = vsub.s32 %v2388, %v2390
        %v2392 = vrot.slane %v2378, %v2391
        %v2393 = vcombine.high %v2385, 0
        %v2395 = vunpack.c.l.s4 1934713408
        %v2396 = vunpack.c.0.s8 %v2395
        %v2397 = vlaneseq
        %v2398 = vshrl.u32 %v2397, 7
        %v2399 = vsub.s32 %v2396, %v2398
        %v2400 = vrot.slane %v2385, %v2399
        %v2402 = vunpack.c.l.s4 1934713408
        %v2403 = vunpack.c.0.s8 %v2402
        %v2404 = vlaneseq
        %v2405 = vshrl.u32 %v2404, 7
        %v2406 = vsub.s32 %v2403, %v2405
        %v2407 = vrot.slane %v2393, %v2406
        %v2408 = vcombine.high %v2392, 0
        %v2410 = vunpack.c.l.s4 1934713408
        %v2411 = vunpack.c.0.s8 %v2410
        %v2412 = vlaneseq
        %v2413 = vshrl.u32 %v2412, 7
        %v2414 = vsub.s32 %v2411, %v2413
        %v2415 = vrot.slane %v2392, %v2414
        %v2417 = vunpack.c.l.s4 1934713408
        %v2418 = vunpack.c.0.s8 %v2417
        %v2419 = vlaneseq
        %v2420 = vshrl.u32 %v2419, 7
        %v2421 = vsub.s32 %v2418, %v2420
        %v2422 = vrot.slane %v2408, %v2421
        %v2423 = vcombine.high %v2400, 0
        %v2424 = vcombine.high %v2407, 0
        %v2425 = vcombine.high %v2415, 0
        %v2426 = vcombine.high %v2422, 0
        %v2427 = vcombine.high %v2376, %v657
        %v2429 = vunpack.c.l.s4 1983009808
        %v2430 = vunpack.c.0.s8 %v2429
        %v2431 = vlaneseq
        %v2432 = vshrl.u32 %v2431, 7
        %v2433 = vsub.s32 %v2430, %v2432
        %v2434 = vrot.slane %v2376, %v2433
        %v2436 = vunpack.c.l.s4 1983009808
        %v2437 = vunpack.c.0.s8 %v2436
        %v2438 = vlaneseq
        %v2439 = vshrl.u32 %v2438, 7
        %v2440 = vsub.s32 %v2437, %v2439
        %v2441 = vrot.slane %v2427, %v2440
        %v2442 = vcombine.high %v2434, 0
        %v2444 = vunpack.c.l.s4 1934713408
        %v2445 = vunpack.c.0.s8 %v2444
        %v2446 = vlaneseq
        %v2447 = vshrl.u32 %v2446, 7
        %v2448 = vsub.s32 %v2445, %v2447
        %v2449 = vrot.slane %v2434, %v2448
        %v2451 = vunpack.c.l.s4 1934713408
        %v2452 = vunpack.c.0.s8 %v2451
        %v2453 = vlaneseq
        %v2454 = vshrl.u32 %v2453, 7
        %v2455 = vsub.s32 %v2452, %v2454
        %v2456 = vrot.slane %v2442, %v2455
        %v2457 = vcombine.high %v2441, 0
        %v2459 = vunpack.c.l.s4 1934713408
        %v2460 = vunpack.c.0.s8 %v2459
        %v2461 = vlaneseq
        %v2462 = vshrl.u32 %v2461, 7
        %v2463 = vsub.s32 %v2460, %v2462
        %v2464 = vrot.slane %v2441, %v2463
        %v2466 = vunpack.c.l.s4 1934713408
        %v2467 = vunpack.c.0.s8 %v2466
        %v2468 = vlaneseq
        %v2469 = vshrl.u32 %v2468, 7
        %v2470 = vsub.s32 %v2467, %v2469
        %v2471 = vrot.slane %v2457, %v2470
        %v2472 = vcombine.high %v2449, 0
        %v2473 = vcombine.high %v2456, 0
        %v2474 = vcombine.high %v2464, 0
        %v2475 = vcombine.high %v2471, 0
        %2477 = vrot.lane.b32.xlu0 %v2449, 16
        %v2478 = vpop.permute.xlu0 %2477
        %2480 = vrot.lane.b32.xlu0 %v2423, 32
        %v2481 = vpop.permute.xlu0 %2480
        %2483 = vrot.lane.b32.xlu0 %v2472, 48
        %v2484 = vpop.permute.xlu0 %2483
        %2486 = vrot.lane.b32.xlu0 %v2407, 64
        %v2487 = vpop.permute.xlu0 %2486
        %2489 = vrot.lane.b32.xlu0 %v2456, 80
        %v2490 = vpop.permute.xlu0 %2489
        %2492 = vrot.lane.b32.xlu0 %v2424, 96
        %v2493 = vpop.permute.xlu0 %2492
        %2495 = vrot.lane.b32.xlu0 %v2473, 112
        %v2496 = vpop.permute.xlu0 %2495
        %2498 = vrot.lane.b32.xlu0 %v2464, 16
        %v2499 = vpop.permute.xlu0 %2498
        %2501 = vrot.lane.b32.xlu0 %v2425, 32
        %v2502 = vpop.permute.xlu0 %2501
        %2504 = vrot.lane.b32.xlu0 %v2474, 48
        %v2505 = vpop.permute.xlu0 %2504
        %2507 = vrot.lane.b32.xlu0 %v2422, 64
        %v2508 = vpop.permute.xlu0 %2507
        %2510 = vrot.lane.b32.xlu0 %v2471, 80
        %v2511 = vpop.permute.xlu0 %2510
        %2513 = vrot.lane.b32.xlu0 %v2426, 96
        %v2514 = vpop.permute.xlu0 %2513
        %2516 = vrot.lane.b32.xlu0 %v2475, 112
        %v2517 = vpop.permute.xlu0 %2516
        %v2520 = vsel %vm863, %v2400, %v2478
        %v2522 = vsel %vm1212, %v2520, %v2481
        %v2524 = vsel %vm1215, %v2522, %v2484
        %v2526 = vsel %vm1218, %v2524, %v2487
        %v2528 = vsel %vm1221, %v2526, %v2490
        %v2530 = vsel %vm1224, %v2528, %v2493
        %v2532 = vsel %vm1227, %v2530, %v2496
        %v2536 = vsel %vm863, %v2415, %v2499
        %v2538 = vsel %vm1212, %v2536, %v2502
        %v2540 = vsel %vm1215, %v2538, %v2505
        %v2542 = vsel %vm1218, %v2540, %v2508
        %v2544 = vsel %vm1221, %v2542, %v2511
        %v2546 = vsel %vm1224, %v2544, %v2514
        %v2548 = vsel %vm1227, %v2546, %v2517
        %v2550 = vadd.bf16 %v2532, %v495
        %v2551 = vadd.bf16 %v2548, %v496
        %v2552 = vld [vmem:[%s10] sm:$0x3]
        %v2554 = vsel %vm1486, %v2552, 0
        %v2557 = vsel %vm1490, %v2550, 0
        %v2560 = vsel %vm1490, %v2551, 0
        %2562 = vmatprep.subr.bf16.mxu0 0
        %2563 = vmatpush1.bf16.msra.mxu0 0
        %2564 = vmatprep.subr.bf16.mxu0 0
        %2565 = vmatpush1.bf16.msra.mxu0 0
        %2566 = vmatprep.subr.bf16.mxu0 0
        %2567 = vmatpush1.bf16.msra.mxu0 0
        %2568 = vmatprep.subr.bf16.mxu0 0
        %2569 = vmatpush1.bf16.msra.mxu0 0
        %2570 = vmatprep.subr.bf16.mxu0 0
        %2571 = vmatpush1.bf16.msra.mxu0 0
        %2572 = vmatprep.subr.bf16.mxu0 0
        %2573 = vmatpush1.bf16.msra.mxu0 0
        %2574 = vmatprep.subr.bf16.mxu0 0
        %2575 = vmatpush1.bf16.msra.mxu0 0
        %2576 = vmatprep.subr.bf16.mxu0 %v2560
        %2577 = vmatpush1.bf16.msra.mxu0 %v2557
        %2578 = vmatprep.subr.bf16.mxu0 0
        %2579 = vmatpush2.bf16.msra.mxu0 0
        %2580 = vmatprep.subr.bf16.mxu0 0
        %2581 = vmatpush2.bf16.msra.mxu0 0
        %2582 = vmatprep.subr.bf16.mxu0 0
        %2583 = vmatpush2.bf16.msra.mxu0 0
        %2584 = vmatprep.subr.bf16.mxu0 0
        %2585 = vmatpush2.bf16.msra.mxu0 0
        %2586 = vmatprep.subr.bf16.mxu0 0
        %2587 = vmatpush2.bf16.msra.mxu0 0
        %2588 = vmatprep.subr.bf16.mxu0 0
        %2589 = vmatpush2.bf16.msra.mxu0 0
        %2590 = vmatprep.subr.bf16.mxu0 0
        %2591 = vmatpush2.bf16.msra.mxu0 0
        %2592 = vmatprep.subr.bf16.mxu0 0
        %2593 = vmatpush2.bf16.msra.mxu0 0
        %2594 = vmatprep.mubr.bf16.mxu0 0
        %2595 = vmatmul.mubr.bf16.gmra.mxu0 %v2554
        %v2596 = vpop.f32.mrf.mxu0
        %v2597 = vadd.f32 0.0, %v2596
        %v2598 = vpop.f32.mrf.mxu0
        %v2599 = vadd.f32 0.0, %v2598
        %v2600 = vpop.f32.mrf.mxu0
        %v2601 = vpop.f32.mrf.mxu0
        %2602 = vdwg.mxu0
        %v2605 = vcombine.low %v2597, %v2599
        %2607 = vst [vmem:[%s421] sm:$0xff] %v2605
        %s2608 = sand.u32 %s271, 1
        %s2609 = scalar_lea.sflag [#allocation4], %s2608
        %s2610 = sand.u32 %s271, 1
        %s2611 = smul.addr %s2610, 8
        %s2612 = scalar_lea.vmem [#allocation8], %s2611
        // Predicated region
        $region77: #{tpu_custom_call.1} parent=63 // pred_check
          %p2613 = pneg %p281
        $region78: #{tpu_custom_call.1} parent=63 // pred_check_branch
          %2615 = sbr.rel (%p2613) target = $region80
        $region79: #{tpu_custom_call.1} parent=63 // pred_region
          %s2617 = ssub.s32 128, 128
          %2618 = vsyncadd %s2609, %s2617
          %s2619 = smul.addr %s27, 2
          %s2620 = smul.addr %s2619, 64
          %s2621 = scalar_lea.hbm %s11, %s2620
          %s2623 = sshll.u32 %s2612, 4
          %s2624 = int_to_ptr.vmem [resolvable:$true] %s2623
          %2626 = dma.vmem_to_hbm [thread:$0]  %s2624, 128, %s2621, %s2609
        $region80: #{tpu_custom_call.1} parent=63 // pred_fallthru
          _
      $region64: #{tpu_custom_call.1} parent=5 // pred_fallthru
        _
      %p2627 = scmp.le.s32.totalorder 2, %s22
      // Predicated region
      $region81: #{tpu_custom_call.1} parent=5 // pred_check
        %p2628 = pneg %p2627
      $region82: #{tpu_custom_call.1} parent=5 // pred_check_branch
        %2630 = sbr.rel (%p2628) target = $region84
      $region83: #{tpu_custom_call.1} parent=5 // pred_region
        %s2631 = ssub.s32 %s22, 2
        // Predicated region
        $region85: #{tpu_custom_call.1} parent=83 // pred_check
          %p2632 = pneg %p287
        $region86: #{tpu_custom_call.1} parent=83 // pred_check_branch
          %2634 = sbr.rel (%p2632) target = $region88
        $region87: #{tpu_custom_call.1} parent=83 // pred_region
          %s2635 = sand.u32 %s272, 1
          %s2636 = scalar_lea.sflag [#allocation4], %s2635
          %s2637 = sand.u32 %s272, 1
          %s2638 = smul.addr %s2637, 8
          %s2639 = scalar_lea.vmem [#allocation8], %s2638
          %2640 = dma.done %s2636, 128
        $region88: #{tpu_custom_call.1} parent=83 // pred_fallthru
          _
      $region84: #{tpu_custom_call.1} parent=5 // pred_fallthru
        _
    $region6: #{tpu_custom_call.1} parent=1 // loop_footer
      %s26 = sadd.s32 1, %s22
    $region7: #{tpu_custom_call.1} parent=1 // loop_footer_branch
      %21 = sbr.rel target = $region3
    $region8: #{tpu_custom_call.1} parent=1 // loop_exit
      _
    %2641 = vsyncpa [#allocation3], 1
    %s2642 = scalar_lea.sflag [#allocation3], 1
    %2643 = vsyncpa %s2642, 1
    %2644 = vsyncpa [#allocation6], 1
    %2645 = vsyncpa [#allocation4], 1
    %s2646 = scalar_lea.sflag [#allocation4], 1
    %2647 = vsyncpa %s2646, 1

</llo_original>
